<compile_context>
chip_gen: v5e
topology: v5e:2x2
jax: 0.10.0
libtpu: 0.0.40
codegen_flags: <defaults>
</compile_context>

<pallas_src>
import functools

import jax
import jax.numpy as jnp
from jax import lax
from jax.experimental import pallas as pl
from jax.experimental.pallas import tpu as pltpu

VALID_THRESHOLD = 1e-6
EPSILON = 1e-8
SCALES = 4
_LANES = 128
_OUT_SUBLANES = 8


def _msgil_fused_kernel(pred_ref, gt_ref, out_ref, *, scales, threshold):
    """One grid step = one (blk, H, W) batch of depth maps; all scales fused.

    Grid is (ncores, steps).  Axis 0 is 'parallel' (sharded across TensorCores
    where the hardware has more than one); axis 1 is the reduction over image
    batches with an output-resident accumulator (init via pl.when on step 0).
    """
    step = pl.program_id(1)

    @pl.when(step == 0)
    def _init():
        out_ref[...] = jnp.zeros_like(out_ref)

    blk, h, w = pred_ref.shape
    out_rows = out_ref.shape[1]

    pred = pred_ref[...].astype(jnp.float32)   # (blk, H, W)
    gt = gt_ref[...].astype(jnp.float32)       # (blk, H, W)

    # mask / clamp / log computed exactly once per batch, shared by all scales.
    # One EUP log on the ratio instead of log(pred) - log(gt).
    mask = (gt > threshold).astype(jnp.float32)
    d = jnp.log(jnp.maximum(pred, threshold) / jnp.maximum(gt, threshold))

    # Full-resolution coordinates used to emulate the ::s,::s subsampling with
    # element-wise selection masks (no strided gathers needed in the kernel).
    row = lax.broadcasted_iota(jnp.int32, (h, w), 0)
    col = lax.broadcasted_iota(jnp.int32, (h, w), 1)

    grad_sums = []
    valid_sums = []
    for si in range(scales):
        s = 1 << si
        off = 2 * s            # offset 2 in subsampled space == 2*s at full res
        g_s = jnp.float32(0.0)
        v_s = jnp.float32(0.0)
        if s == 1:
            msel = mask        # every pixel survives ::1,::1
        else:
            sel = (((row & (s - 1)) == 0) & ((col & (s - 1)) == 0)).astype(jnp.float32)
            msel = mask * sel  # (blk, H, W); sel broadcasts over the batch dim
        # TODO(synk): replace the :-off / off: slice pairs with pltpu.roll plus a
        # boundary iota mask (XLU instead of materialized shifted copies), and
        # sublane-strided scratch reads for scales > 1, once rank-3 rotates /
        # strided middle-dim reads lower cleanly in Mosaic.
        if h > off:            # vertical gradient pairs exist at this scale
            pair = msel[:, :-off, :] * msel[:, off:, :]
            g_s = g_s + jnp.sum(jnp.abs(d[:, :-off, :] - d[:, off:, :]) * pair)
            v_s = v_s + jnp.sum(pair)
        if w > off:            # horizontal gradient pairs
            pair = msel[:, :, :-off] * msel[:, :, off:]
            g_s = g_s + jnp.sum(jnp.abs(d[:, :, :-off] - d[:, :, off:]) * pair)
            v_s = v_s + jnp.sum(pair)
        grad_sums.append(g_s)
        valid_sums.append(v_s)

    # Pack the 2*scales scalars into one lane-dense (out_rows, 128) block:
    #   [si, 0] -> gradient sum, [si, 1] -> valid-pair count.
    # Per-step cost of this packing is now amortized over the whole batch.
    rr = lax.broadcasted_iota(jnp.int32, (out_rows, _LANES), 0)
    cc = lax.broadcasted_iota(jnp.int32, (out_rows, _LANES), 1)
    vals = jnp.zeros((out_rows, _LANES), jnp.float32)
    for si in range(scales):
        vals = vals + grad_sums[si] * ((rr == si) & (cc == 0)).astype(jnp.float32)
        vals = vals + valid_sums[si] * ((rr == si) & (cc == 1)).astype(jnp.float32)

    out_ref[0] = out_ref[0] + vals


def _num_tensorcores():
    """2 only on chips whose grid 'parallel' axis shards across TensorCores."""
    try:
        kind = jax.devices()[0].device_kind.lower()
    except Exception:
        return 1
    return 2 if any(tag in kind for tag in ("v7", "v4", "v5p")) else 1


@functools.partial(jax.jit, static_argnames=("scales", "ncores"))
def _msgil_norm_loss_impl(pred, gt, scales, ncores):
    n, c, h, w = pred.shape
    nc = n * c
    pred2 = pred.reshape(nc, h, w)   # pure reshape; NCHW is contiguous over (N*C, H, W)
    gt2 = gt.reshape(nc, h, w)

    ncores = ncores if nc >= 2 else 1
    images_per_core = pl.cdiv(nc, ncores)

    # Batch several images per grid step.  Keep 2 inputs x 2 pipeline buffers
    # plus ~12 in-kernel (blk, H, W) f32 temporaries under ~24 MiB of VMEM.
    plane_bytes = h * w * 4
    blk_cap = max(1, (24 * 2**20) // (16 * plane_bytes))
    blk = int(min(32, blk_cap, images_per_core))
    steps = pl.cdiv(images_per_core, blk)
    padded = ncores * steps * blk
    if padded != nc:
        # Zero-padded GT images self-mask (mask == 0), so padded work
        # contributes nothing and no in-kernel clamp/skip logic is needed.
        pad = padded - nc
        pred2 = jnp.pad(pred2, ((0, pad), (0, 0), (0, 0)))
        gt2 = jnp.pad(gt2, ((0, pad), (0, 0), (0, 0)))

    out_rows = max(_OUT_SUBLANES, _OUT_SUBLANES * pl.cdiv(scales, _OUT_SUBLANES))

    kernel = functools.partial(
        _msgil_fused_kernel, scales=scales, threshold=VALID_THRESHOLD)

    # VMEM budget: pipeline buffers + in-kernel temporaries, capped at 40 MiB so
    # it also fits v7x's 64 MiB physical VMEM.
    step_bytes = 16 * blk * plane_bytes
    vmem_limit = int(min(40 * 2**20, max(16 * 2**20, 2 * step_bytes)))
    # TODO(synk): for very large depth maps (per-image f32 plane in the tens of
    # MiB) tile H with a 2*2**(scales-1)-row halo and accumulate across H tiles
    # so the working set stays inside v7x's 64 MiB VMEM.

    cost = pl.CostEstimate(
        flops=int(30 * padded * h * w * scales),
        transcendentals=int(2 * padded * h * w),
        bytes_accessed=int(2 * padded * h * w * 4 + ncores * out_rows * _LANES * 4),
    )

    sums = pl.pallas_call(
        kernel,
        grid=(ncores, steps),
        in_specs=[
            pl.BlockSpec((blk, h, w), lambda i, j: (i * steps + j, 0, 0)),
            pl.BlockSpec((blk, h, w), lambda i, j: (i * steps + j, 0, 0)),
        ],
        out_specs=pl.BlockSpec((1, out_rows, _LANES), lambda i, j: (i, 0, 0)),
        out_shape=jax.ShapeDtypeStruct((ncores, out_rows, _LANES), jnp.float32),
        compiler_params=pltpu.CompilerParams(
            dimension_semantics=("parallel", "arbitrary"),
            vmem_limit_bytes=vmem_limit,
        ),
        cost_estimate=cost,
    )(pred2, gt2)

    totals = jnp.sum(sums, axis=0)   # (out_rows, 128): per-scale batch-wide sums
    loss = jnp.float32(0.0)
    for si in range(scales):
        loss = loss + totals[si, 0] / (totals[si, 1] + EPSILON)
    return loss


def msgil_norm_loss(pred, gt, scales=SCALES):
    """Equivalent of MSGIL_NORM_Loss(scale=scales, valid_threshold=1e-6).forward."""
    return _msgil_norm_loss_impl(pred, gt, scales=scales, ncores=_num_tensorcores())


def _reference(pred, gt, scales=SCALES):
    """Pure-JAX reference mirroring the PyTorch module."""
    mask = (gt > VALID_THRESHOLD).astype(jnp.float32)
    lp = jnp.log(jnp.maximum(pred, VALID_THRESHOLD))
    lg = jnp.log(jnp.maximum(gt, VALID_THRESHOLD))
    total = jnp.float32(0.0)
    for i in range(scales):
        s = 2 ** i
        d = lp[:, :, ::s, ::s] - lg[:, :, ::s, ::s]
        m = mask[:, :, ::s, ::s]
        v_mask = m[:, :, :-2, :] * m[:, :, 2:, :]
        v_grad = jnp.abs(d[:, :, :-2, :] - d[:, :, 2:, :]) * v_mask
        h_mask = m[:, :, :, :-2] * m[:, :, :, 2:]
        h_grad = jnp.abs(d[:, :, :, :-2] - d[:, :, :, 2:]) * h_mask
        num = jnp.sum(h_grad) + jnp.sum(v_grad)
        den = jnp.sum(h_mask) + jnp.sum(v_mask) + EPSILON
        total = total + num / den
    return total


if __name__ == "__main__":
    key = jax.random.PRNGKey(0)
    k1, k2 = jax.random.split(key)
    # Depth-style inputs: N=3, C=1, H=W=32 (NCHW, matching the PyTorch module).
    # N*C=3 exercises multi-image batching / padding; H=W=32 makes all 4
    # scales active.
    pred = jax.random.uniform(k1, (3, 1, 32, 32), jnp.float32, 0.1, 10.0)
    gt = jax.random.uniform(k2, (3, 1, 32, 32), jnp.float32, 0.0, 10.0)
    # Zero out some GT pixels so the validity mask is exercised.
    gt = gt.at[:, :, ::5, ::3].set(0.0)

    out = msgil_norm_loss(pred, gt)
    out = jax.block_until_ready(out)

    ref = _reference(pred, gt)
    assert jnp.allclose(out, ref, rtol=1e-5, atol=1e-5), (float(out), float(ref))
    print("KERNEL_OK")
</pallas_src>

<mosaic_0001>
module attributes {stable_mosaic.version = 11 : i64} {
  func.func @_msgil_fused_kernel(%arg0: i32, %arg1: i32, %arg2: memref<3x32x32xf32, #tpu.memory_space<vmem>>, %arg3: memref<3x32x32xf32, #tpu.memory_space<vmem>>, %arg4: memref<1x8x128xf32, #tpu.memory_space<vmem>>) attributes {dimension_semantics = [#tpu.dimension_semantics<parallel>, #tpu.dimension_semantics<arbitrary>], iteration_bounds = array<i64: 1, 1>, scalar_prefetch = 0 : i64, scratch_operands = 0 : i64, tpu.core_type = #tpu.core_type<tc>, window_params = [{transform_indices = @transform_0, window_bounds = array<i64: 3, 32, 32>}, {transform_indices = @transform_1, window_bounds = array<i64: 3, 32, 32>}, {transform_indices = @transform_2, window_bounds = array<i64: 1, 8, 128>}]} {
    %c0_i32 = arith.constant 0 : i32
    %0 = arith.cmpi eq, %arg1, %c0_i32 : i32
    %1 = arith.extui %0 : i1 to i32
    %c0_i32_0 = arith.constant 0 : i32
    %2 = arith.cmpi ne, %1, %c0_i32_0 : i32
    scf.if %2 {
      %cst_63 = arith.constant 0.000000e+00 : f32
      %292 = vector.broadcast %cst_63 : f32 to vector<1x8x128xf32>
      %c0_64 = arith.constant 0 : index
      %c0_65 = arith.constant 0 : index
      %c0_66 = arith.constant 0 : index
      %293 = vector.load %arg4[%c0_64, %c0_65, %c0_66] : memref<1x8x128xf32, #tpu.memory_space<vmem>>, vector<1x8x128xf32>
      tpu.vector_store %arg4[%c0_64, %c0_65, %c0_66], %292 {strides = array<i32>} : memref<1x8x128xf32, #tpu.memory_space<vmem>>, vector<1x8x128xf32>,
    } else {
    }
    %c0 = arith.constant 0 : index
    %c0_1 = arith.constant 0 : index
    %c0_2 = arith.constant 0 : index
    %3 = vector.load %arg2[%c0, %c0_1, %c0_2] : memref<3x32x32xf32, #tpu.memory_space<vmem>>, vector<3x32x32xf32>
    %c0_3 = arith.constant 0 : index
    %c0_4 = arith.constant 0 : index
    %c0_5 = arith.constant 0 : index
    %4 = vector.load %arg3[%c0_3, %c0_4, %c0_5] : memref<3x32x32xf32, #tpu.memory_space<vmem>>, vector<3x32x32xf32>
    %cst = arith.constant 9.99999997E-7 : f32
    %5 = vector.broadcast %cst : f32 to vector<3x32x32xf32>
    %6 = arith.cmpf ogt, %4, %5 : vector<3x32x32xf32>
    %7 = arith.extui %6 : vector<3x32x32xi1> to vector<3x32x32xi32>
    %8 = arith.sitofp %7 : vector<3x32x32xi32> to vector<3x32x32xf32>
    %cst_6 = arith.constant 9.99999997E-7 : f32
    %9 = vector.broadcast %cst_6 : f32 to vector<3x32x32xf32>
    %10 = arith.maximumf %3, %9 : vector<3x32x32xf32>
    %cst_7 = arith.constant 9.99999997E-7 : f32
    %11 = vector.broadcast %cst_7 : f32 to vector<3x32x32xf32>
    %12 = arith.maximumf %4, %11 : vector<3x32x32xf32>
    %13 = arith.divf %10, %12 : vector<3x32x32xf32>
    %14 = math.log %13 : vector<3x32x32xf32>
    %15 = tpu.iota {dimensions = array<i32: 0>} : vector<32x32xi32>
    %16 = tpu.iota {dimensions = array<i32: 1>} : vector<32x32xi32>
    %17 = vector.extract_strided_slice %8 {offsets = [0, 0, 0], sizes = [3, 30, 32], strides = [1, 1, 1]} : vector<3x32x32xf32> to vector<3x30x32xf32>
    %18 = vector.extract_strided_slice %8 {offsets = [0, 2, 0], sizes = [3, 30, 32], strides = [1, 1, 1]} : vector<3x32x32xf32> to vector<3x30x32xf32>
    %19 = arith.mulf %17, %18 : vector<3x30x32xf32>
    %20 = vector.extract_strided_slice %14 {offsets = [0, 0, 0], sizes = [3, 30, 32], strides = [1, 1, 1]} : vector<3x32x32xf32> to vector<3x30x32xf32>
    %21 = vector.extract_strided_slice %14 {offsets = [0, 2, 0], sizes = [3, 30, 32], strides = [1, 1, 1]} : vector<3x32x32xf32> to vector<3x30x32xf32>
    %22 = arith.subf %20, %21 : vector<3x30x32xf32>
    %23 = math.absf %22 : vector<3x30x32xf32>
    %24 = arith.mulf %23, %19 : vector<3x30x32xf32>
    %25 = vector.shape_cast %24 : vector<3x30x32xf32> to vector<1x3x30x32xf32>
    %cst_8 = arith.constant dense<0.000000e+00> : vector<1xf32>
    %26 = vector.multi_reduction <add>, %25, %cst_8 [1, 2, 3] : vector<1x3x30x32xf32> to vector<1xf32>
    %27 = vector.shape_cast %26 : vector<1xf32> to vector<1x1x1x1xf32>
    %28 = vector.extract %27[0, 0, 0, 0] : f32 from vector<1x1x1x1xf32>
    %cst_9 = arith.constant 0.000000e+00 : f32
    %29 = arith.addf %cst_9, %28 : f32
    %30 = vector.shape_cast %19 : vector<3x30x32xf32> to vector<1x3x30x32xf32>
    %cst_10 = arith.constant dense<0.000000e+00> : vector<1xf32>
    %31 = vector.multi_reduction <add>, %30, %cst_10 [1, 2, 3] : vector<1x3x30x32xf32> to vector<1xf32>
    %32 = vector.shape_cast %31 : vector<1xf32> to vector<1x1x1x1xf32>
    %33 = vector.extract %32[0, 0, 0, 0] : f32 from vector<1x1x1x1xf32>
    %cst_11 = arith.constant 0.000000e+00 : f32
    %34 = arith.addf %cst_11, %33 : f32
    %35 = vector.extract_strided_slice %8 {offsets = [0, 0, 0], sizes = [3, 32, 30], strides = [1, 1, 1]} : vector<3x32x32xf32> to vector<3x32x30xf32>
    %36 = vector.extract_strided_slice %8 {offsets = [0, 0, 2], sizes = [3, 32, 30], strides = [1, 1, 1]} : vector<3x32x32xf32> to vector<3x32x30xf32>
    %37 = arith.mulf %35, %36 : vector<3x32x30xf32>
    %38 = vector.extract_strided_slice %14 {offsets = [0, 0, 0], sizes = [3, 32, 30], strides = [1, 1, 1]} : vector<3x32x32xf32> to vector<3x32x30xf32>
    %39 = vector.extract_strided_slice %14 {offsets = [0, 0, 2], sizes = [3, 32, 30], strides = [1, 1, 1]} : vector<3x32x32xf32> to vector<3x32x30xf32>
    %40 = arith.subf %38, %39 : vector<3x32x30xf32>
    %41 = math.absf %40 : vector<3x32x30xf32>
    %42 = arith.mulf %41, %37 : vector<3x32x30xf32>
    %43 = vector.shape_cast %42 : vector<3x32x30xf32> to vector<1x3x32x30xf32>
    %cst_12 = arith.constant dense<0.000000e+00> : vector<1xf32>
    %44 = vector.multi_reduction <add>, %43, %cst_12 [1, 2, 3] : vector<1x3x32x30xf32> to vector<1xf32>
    %45 = vector.shape_cast %44 : vector<1xf32> to vector<1x1x1x1xf32>
    %46 = vector.extract %45[0, 0, 0, 0] : f32 from vector<1x1x1x1xf32>
    %47 = arith.addf %29, %46 : f32
    %48 = vector.shape_cast %37 : vector<3x32x30xf32> to vector<1x3x32x30xf32>
    %cst_13 = arith.constant dense<0.000000e+00> : vector<1xf32>
    %49 = vector.multi_reduction <add>, %48, %cst_13 [1, 2, 3] : vector<1x3x32x30xf32> to vector<1xf32>
    %50 = vector.shape_cast %49 : vector<1xf32> to vector<1x1x1x1xf32>
    %51 = vector.extract %50[0, 0, 0, 0] : f32 from vector<1x1x1x1xf32>
    %52 = arith.addf %34, %51 : f32
    %c1_i32 = arith.constant 1 : i32
    %53 = vector.broadcast %c1_i32 : i32 to vector<32x32xi32>
    %54 = arith.andi %15, %53 : vector<32x32xi32>
    %c0_i32_14 = arith.constant 0 : i32
    %55 = vector.broadcast %c0_i32_14 : i32 to vector<32x32xi32>
    %56 = arith.cmpi eq, %54, %55 : vector<32x32xi32>
    %c1_i32_15 = arith.constant 1 : i32
    %57 = vector.broadcast %c1_i32_15 : i32 to vector<32x32xi32>
    %58 = arith.andi %16, %57 : vector<32x32xi32>
    %c0_i32_16 = arith.constant 0 : i32
    %59 = vector.broadcast %c0_i32_16 : i32 to vector<32x32xi32>
    %60 = arith.cmpi eq, %58, %59 : vector<32x32xi32>
    %61 = arith.andi %56, %60 : vector<32x32xi1>
    %62 = arith.extui %61 : vector<32x32xi1> to vector<32x32xi32>
    %63 = arith.sitofp %62 : vector<32x32xi32> to vector<32x32xf32>
    %64 = vector.shape_cast %63 : vector<32x32xf32> to vector<1x32x32xf32>
    %65 = vector.broadcast %64 : vector<1x32x32xf32> to vector<3x32x32xf32>
    %66 = arith.mulf %8, %65 : vector<3x32x32xf32>
    %67 = vector.extract_strided_slice %66 {offsets = [0, 0, 0], sizes = [3, 28, 32], strides = [1, 1, 1]} : vector<3x32x32xf32> to vector<3x28x32xf32>
    %68 = vector.extract_strided_slice %66 {offsets = [0, 4, 0], sizes = [3, 28, 32], strides = [1, 1, 1]} : vector<3x32x32xf32> to vector<3x28x32xf32>
    %69 = arith.mulf %67, %68 : vector<3x28x32xf32>
    %70 = vector.extract_strided_slice %14 {offsets = [0, 0, 0], sizes = [3, 28, 32], strides = [1, 1, 1]} : vector<3x32x32xf32> to vector<3x28x32xf32>
    %71 = vector.extract_strided_slice %14 {offsets = [0, 4, 0], sizes = [3, 28, 32], strides = [1, 1, 1]} : vector<3x32x32xf32> to vector<3x28x32xf32>
    %72 = arith.subf %70, %71 : vector<3x28x32xf32>
    %73 = math.absf %72 : vector<3x28x32xf32>
    %74 = arith.mulf %73, %69 : vector<3x28x32xf32>
    %75 = vector.shape_cast %74 : vector<3x28x32xf32> to vector<1x3x28x32xf32>
    %cst_17 = arith.constant dense<0.000000e+00> : vector<1xf32>
    %76 = vector.multi_reduction <add>, %75, %cst_17 [1, 2, 3] : vector<1x3x28x32xf32> to vector<1xf32>
    %77 = vector.shape_cast %76 : vector<1xf32> to vector<1x1x1x1xf32>
    %78 = vector.extract %77[0, 0, 0, 0] : f32 from vector<1x1x1x1xf32>
    %cst_18 = arith.constant 0.000000e+00 : f32
    %79 = arith.addf %cst_18, %78 : f32
    %80 = vector.shape_cast %69 : vector<3x28x32xf32> to vector<1x3x28x32xf32>
    %cst_19 = arith.constant dense<0.000000e+00> : vector<1xf32>
    %81 = vector.multi_reduction <add>, %80, %cst_19 [1, 2, 3] : vector<1x3x28x32xf32> to vector<1xf32>
    %82 = vector.shape_cast %81 : vector<1xf32> to vector<1x1x1x1xf32>
    %83 = vector.extract %82[0, 0, 0, 0] : f32 from vector<1x1x1x1xf32>
    %cst_20 = arith.constant 0.000000e+00 : f32
    %84 = arith.addf %cst_20, %83 : f32
    %85 = vector.extract_strided_slice %66 {offsets = [0, 0, 0], sizes = [3, 32, 28], strides = [1, 1, 1]} : vector<3x32x32xf32> to vector<3x32x28xf32>
    %86 = vector.extract_strided_slice %66 {offsets = [0, 0, 4], sizes = [3, 32, 28], strides = [1, 1, 1]} : vector<3x32x32xf32> to vector<3x32x28xf32>
    %87 = arith.mulf %85, %86 : vector<3x32x28xf32>
    %88 = vector.extract_strided_slice %14 {offsets = [0, 0, 0], sizes = [3, 32, 28], strides = [1, 1, 1]} : vector<3x32x32xf32> to vector<3x32x28xf32>
    %89 = vector.extract_strided_slice %14 {offsets = [0, 0, 4], sizes = [3, 32, 28], strides = [1, 1, 1]} : vector<3x32x32xf32> to vector<3x32x28xf32>
    %90 = arith.subf %88, %89 : vector<3x32x28xf32>
    %91 = math.absf %90 : vector<3x32x28xf32>
    %92 = arith.mulf %91, %87 : vector<3x32x28xf32>
    %93 = vector.shape_cast %92 : vector<3x32x28xf32> to vector<1x3x32x28xf32>
    %cst_21 = arith.constant dense<0.000000e+00> : vector<1xf32>
    %94 = vector.multi_reduction <add>, %93, %cst_21 [1, 2, 3] : vector<1x3x32x28xf32> to vector<1xf32>
    %95 = vector.shape_cast %94 : vector<1xf32> to vector<1x1x1x1xf32>
    %96 = vector.extract %95[0, 0, 0, 0] : f32 from vector<1x1x1x1xf32>
    %97 = arith.addf %79, %96 : f32
    %98 = vector.shape_cast %87 : vector<3x32x28xf32> to vector<1x3x32x28xf32>
    %cst_22 = arith.constant dense<0.000000e+00> : vector<1xf32>
    %99 = vector.multi_reduction <add>, %98, %cst_22 [1, 2, 3] : vector<1x3x32x28xf32> to vector<1xf32>
    %100 = vector.shape_cast %99 : vector<1xf32> to vector<1x1x1x1xf32>
    %101 = vector.extract %100[0, 0, 0, 0] : f32 from vector<1x1x1x1xf32>
    %102 = arith.addf %84, %101 : f32
    %c3_i32 = arith.constant 3 : i32
    %103 = vector.broadcast %c3_i32 : i32 to vector<32x32xi32>
    %104 = arith.andi %15, %103 : vector<32x32xi32>
    %c0_i32_23 = arith.constant 0 : i32
    %105 = vector.broadcast %c0_i32_23 : i32 to vector<32x32xi32>
    %106 = arith.cmpi eq, %104, %105 : vector<32x32xi32>
    %c3_i32_24 = arith.constant 3 : i32
    %107 = vector.broadcast %c3_i32_24 : i32 to vector<32x32xi32>
    %108 = arith.andi %16, %107 : vector<32x32xi32>
    %c0_i32_25 = arith.constant 0 : i32
    %109 = vector.broadcast %c0_i32_25 : i32 to vector<32x32xi32>
    %110 = arith.cmpi eq, %108, %109 : vector<32x32xi32>
    %111 = arith.andi %106, %110 : vector<32x32xi1>
    %112 = arith.extui %111 : vector<32x32xi1> to vector<32x32xi32>
    %113 = arith.sitofp %112 : vector<32x32xi32> to vector<32x32xf32>
    %114 = vector.shape_cast %113 : vector<32x32xf32> to vector<1x32x32xf32>
    %115 = vector.broadcast %114 : vector<1x32x32xf32> to vector<3x32x32xf32>
    %116 = arith.mulf %8, %115 : vector<3x32x32xf32>
    %117 = vector.extract_strided_slice %116 {offsets = [0, 0, 0], sizes = [3, 24, 32], strides = [1, 1, 1]} : vector<3x32x32xf32> to vector<3x24x32xf32>
    %118 = vector.extract_strided_slice %116 {offsets = [0, 8, 0], sizes = [3, 24, 32], strides = [1, 1, 1]} : vector<3x32x32xf32> to vector<3x24x32xf32>
    %119 = arith.mulf %117, %118 : vector<3x24x32xf32>
    %120 = vector.extract_strided_slice %14 {offsets = [0, 0, 0], sizes = [3, 24, 32], strides = [1, 1, 1]} : vector<3x32x32xf32> to vector<3x24x32xf32>
    %121 = vector.extract_strided_slice %14 {offsets = [0, 8, 0], sizes = [3, 24, 32], strides = [1, 1, 1]} : vector<3x32x32xf32> to vector<3x24x32xf32>
    %122 = arith.subf %120, %121 : vector<3x24x32xf32>
    %123 = math.absf %122 : vector<3x24x32xf32>
    %124 = arith.mulf %123, %119 : vector<3x24x32xf32>
    %125 = vector.shape_cast %124 : vector<3x24x32xf32> to vector<1x3x24x32xf32>
    %cst_26 = arith.constant dense<0.000000e+00> : vector<1xf32>
    %126 = vector.multi_reduction <add>, %125, %cst_26 [1, 2, 3] : vector<1x3x24x32xf32> to vector<1xf32>
    %127 = vector.shape_cast %126 : vector<1xf32> to vector<1x1x1x1xf32>
    %128 = vector.extract %127[0, 0, 0, 0] : f32 from vector<1x1x1x1xf32>
    %cst_27 = arith.constant 0.000000e+00 : f32
    %129 = arith.addf %cst_27, %128 : f32
    %130 = vector.shape_cast %119 : vector<3x24x32xf32> to vector<1x3x24x32xf32>
    %cst_28 = arith.constant dense<0.000000e+00> : vector<1xf32>
    %131 = vector.multi_reduction <add>, %130, %cst_28 [1, 2, 3] : vector<1x3x24x32xf32> to vector<1xf32>
    %132 = vector.shape_cast %131 : vector<1xf32> to vector<1x1x1x1xf32>
    %133 = vector.extract %132[0, 0, 0, 0] : f32 from vector<1x1x1x1xf32>
    %cst_29 = arith.constant 0.000000e+00 : f32
    %134 = arith.addf %cst_29, %133 : f32
    %135 = vector.extract_strided_slice %116 {offsets = [0, 0, 0], sizes = [3, 32, 24], strides = [1, 1, 1]} : vector<3x32x32xf32> to vector<3x32x24xf32>
    %136 = vector.extract_strided_slice %116 {offsets = [0, 0, 8], sizes = [3, 32, 24], strides = [1, 1, 1]} : vector<3x32x32xf32> to vector<3x32x24xf32>
    %137 = arith.mulf %135, %136 : vector<3x32x24xf32>
    %138 = vector.extract_strided_slice %14 {offsets = [0, 0, 0], sizes = [3, 32, 24], strides = [1, 1, 1]} : vector<3x32x32xf32> to vector<3x32x24xf32>
    %139 = vector.extract_strided_slice %14 {offsets = [0, 0, 8], sizes = [3, 32, 24], strides = [1, 1, 1]} : vector<3x32x32xf32> to vector<3x32x24xf32>
    %140 = arith.subf %138, %139 : vector<3x32x24xf32>
    %141 = math.absf %140 : vector<3x32x24xf32>
    %142 = arith.mulf %141, %137 : vector<3x32x24xf32>
    %143 = vector.shape_cast %142 : vector<3x32x24xf32> to vector<1x3x32x24xf32>
    %cst_30 = arith.constant dense<0.000000e+00> : vector<1xf32>
    %144 = vector.multi_reduction <add>, %143, %cst_30 [1, 2, 3] : vector<1x3x32x24xf32> to vector<1xf32>
    %145 = vector.shape_cast %144 : vector<1xf32> to vector<1x1x1x1xf32>
    %146 = vector.extract %145[0, 0, 0, 0] : f32 from vector<1x1x1x1xf32>
    %147 = arith.addf %129, %146 : f32
    %148 = vector.shape_cast %137 : vector<3x32x24xf32> to vector<1x3x32x24xf32>
    %cst_31 = arith.constant dense<0.000000e+00> : vector<1xf32>
    %149 = vector.multi_reduction <add>, %148, %cst_31 [1, 2, 3] : vector<1x3x32x24xf32> to vector<1xf32>
    %150 = vector.shape_cast %149 : vector<1xf32> to vector<1x1x1x1xf32>
    %151 = vector.extract %150[0, 0, 0, 0] : f32 from vector<1x1x1x1xf32>
    %152 = arith.addf %134, %151 : f32
    %c7_i32 = arith.constant 7 : i32
    %153 = vector.broadcast %c7_i32 : i32 to vector<32x32xi32>
    %154 = arith.andi %15, %153 : vector<32x32xi32>
    %c0_i32_32 = arith.constant 0 : i32
    %155 = vector.broadcast %c0_i32_32 : i32 to vector<32x32xi32>
    %156 = arith.cmpi eq, %154, %155 : vector<32x32xi32>
    %c7_i32_33 = arith.constant 7 : i32
    %157 = vector.broadcast %c7_i32_33 : i32 to vector<32x32xi32>
    %158 = arith.andi %16, %157 : vector<32x32xi32>
    %c0_i32_34 = arith.constant 0 : i32
    %159 = vector.broadcast %c0_i32_34 : i32 to vector<32x32xi32>
    %160 = arith.cmpi eq, %158, %159 : vector<32x32xi32>
    %161 = arith.andi %156, %160 : vector<32x32xi1>
    %162 = arith.extui %161 : vector<32x32xi1> to vector<32x32xi32>
    %163 = arith.sitofp %162 : vector<32x32xi32> to vector<32x32xf32>
    %164 = vector.shape_cast %163 : vector<32x32xf32> to vector<1x32x32xf32>
    %165 = vector.broadcast %164 : vector<1x32x32xf32> to vector<3x32x32xf32>
    %166 = arith.mulf %8, %165 : vector<3x32x32xf32>
    %167 = vector.extract_strided_slice %166 {offsets = [0, 0, 0], sizes = [3, 16, 32], strides = [1, 1, 1]} : vector<3x32x32xf32> to vector<3x16x32xf32>
    %168 = vector.extract_strided_slice %166 {offsets = [0, 16, 0], sizes = [3, 16, 32], strides = [1, 1, 1]} : vector<3x32x32xf32> to vector<3x16x32xf32>
    %169 = arith.mulf %167, %168 : vector<3x16x32xf32>
    %170 = vector.extract_strided_slice %14 {offsets = [0, 0, 0], sizes = [3, 16, 32], strides = [1, 1, 1]} : vector<3x32x32xf32> to vector<3x16x32xf32>
    %171 = vector.extract_strided_slice %14 {offsets = [0, 16, 0], sizes = [3, 16, 32], strides = [1, 1, 1]} : vector<3x32x32xf32> to vector<3x16x32xf32>
    %172 = arith.subf %170, %171 : vector<3x16x32xf32>
    %173 = math.absf %172 : vector<3x16x32xf32>
    %174 = arith.mulf %173, %169 : vector<3x16x32xf32>
    %175 = vector.shape_cast %174 : vector<3x16x32xf32> to vector<1x3x16x32xf32>
    %cst_35 = arith.constant dense<0.000000e+00> : vector<1xf32>
    %176 = vector.multi_reduction <add>, %175, %cst_35 [1, 2, 3] : vector<1x3x16x32xf32> to vector<1xf32>
    %177 = vector.shape_cast %176 : vector<1xf32> to vector<1x1x1x1xf32>
    %178 = vector.extract %177[0, 0, 0, 0] : f32 from vector<1x1x1x1xf32>
    %cst_36 = arith.constant 0.000000e+00 : f32
    %179 = arith.addf %cst_36, %178 : f32
    %180 = vector.shape_cast %169 : vector<3x16x32xf32> to vector<1x3x16x32xf32>
    %cst_37 = arith.constant dense<0.000000e+00> : vector<1xf32>
    %181 = vector.multi_reduction <add>, %180, %cst_37 [1, 2, 3] : vector<1x3x16x32xf32> to vector<1xf32>
    %182 = vector.shape_cast %181 : vector<1xf32> to vector<1x1x1x1xf32>
    %183 = vector.extract %182[0, 0, 0, 0] : f32 from vector<1x1x1x1xf32>
    %cst_38 = arith.constant 0.000000e+00 : f32
    %184 = arith.addf %cst_38, %183 : f32
    %185 = vector.extract_strided_slice %166 {offsets = [0, 0, 0], sizes = [3, 32, 16], strides = [1, 1, 1]} : vector<3x32x32xf32> to vector<3x32x16xf32>
    %186 = vector.extract_strided_slice %166 {offsets = [0, 0, 16], sizes = [3, 32, 16], strides = [1, 1, 1]} : vector<3x32x32xf32> to vector<3x32x16xf32>
    %187 = arith.mulf %185, %186 : vector<3x32x16xf32>
    %188 = vector.extract_strided_slice %14 {offsets = [0, 0, 0], sizes = [3, 32, 16], strides = [1, 1, 1]} : vector<3x32x32xf32> to vector<3x32x16xf32>
    %189 = vector.extract_strided_slice %14 {offsets = [0, 0, 16], sizes = [3, 32, 16], strides = [1, 1, 1]} : vector<3x32x32xf32> to vector<3x32x16xf32>
    %190 = arith.subf %188, %189 : vector<3x32x16xf32>
    %191 = math.absf %190 : vector<3x32x16xf32>
    %192 = arith.mulf %191, %187 : vector<3x32x16xf32>
    %193 = vector.shape_cast %192 : vector<3x32x16xf32> to vector<1x3x32x16xf32>
    %cst_39 = arith.constant dense<0.000000e+00> : vector<1xf32>
    %194 = vector.multi_reduction <add>, %193, %cst_39 [1, 2, 3] : vector<1x3x32x16xf32> to vector<1xf32>
    %195 = vector.shape_cast %194 : vector<1xf32> to vector<1x1x1x1xf32>
    %196 = vector.extract %195[0, 0, 0, 0] : f32 from vector<1x1x1x1xf32>
    %197 = arith.addf %179, %196 : f32
    %198 = vector.shape_cast %187 : vector<3x32x16xf32> to vector<1x3x32x16xf32>
    %cst_40 = arith.constant dense<0.000000e+00> : vector<1xf32>
    %199 = vector.multi_reduction <add>, %198, %cst_40 [1, 2, 3] : vector<1x3x32x16xf32> to vector<1xf32>
    %200 = vector.shape_cast %199 : vector<1xf32> to vector<1x1x1x1xf32>
    %201 = vector.extract %200[0, 0, 0, 0] : f32 from vector<1x1x1x1xf32>
    %202 = arith.addf %184, %201 : f32
    %203 = tpu.iota {dimensions = array<i32: 0>} : vector<8x128xi32>
    %204 = tpu.iota {dimensions = array<i32: 1>} : vector<8x128xi32>
    %cst_41 = arith.constant 0.000000e+00 : f32
    %205 = vector.broadcast %cst_41 : f32 to vector<8x128xf32>
    %c0_i32_42 = arith.constant 0 : i32
    %206 = vector.broadcast %c0_i32_42 : i32 to vector<8x128xi32>
    %207 = arith.cmpi eq, %203, %206 : vector<8x128xi32>
    %c0_i32_43 = arith.constant 0 : i32
    %208 = vector.broadcast %c0_i32_43 : i32 to vector<8x128xi32>
    %209 = arith.cmpi eq, %204, %208 : vector<8x128xi32>
    %210 = arith.andi %207, %209 : vector<8x128xi1>
    %211 = arith.extui %210 : vector<8x128xi1> to vector<8x128xi32>
    %212 = arith.sitofp %211 : vector<8x128xi32> to vector<8x128xf32>
    %213 = vector.broadcast %47 : f32 to vector<8x128xf32>
    %214 = arith.mulf %213, %212 : vector<8x128xf32>
    %215 = arith.addf %205, %214 : vector<8x128xf32>
    %c0_i32_44 = arith.constant 0 : i32
    %216 = vector.broadcast %c0_i32_44 : i32 to vector<8x128xi32>
    %217 = arith.cmpi eq, %203, %216 : vector<8x128xi32>
    %c1_i32_45 = arith.constant 1 : i32
    %218 = vector.broadcast %c1_i32_45 : i32 to vector<8x128xi32>
    %219 = arith.cmpi eq, %204, %218 : vector<8x128xi32>
    %220 = arith.andi %217, %219 : vector<8x128xi1>
    %221 = arith.extui %220 : vector<8x128xi1> to vector<8x128xi32>
    %222 = arith.sitofp %221 : vector<8x128xi32> to vector<8x128xf32>
    %223 = vector.broadcast %52 : f32 to vector<8x128xf32>
    %224 = arith.mulf %223, %222 : vector<8x128xf32>
    %225 = arith.addf %215, %224 : vector<8x128xf32>
    %c1_i32_46 = arith.constant 1 : i32
    %226 = vector.broadcast %c1_i32_46 : i32 to vector<8x128xi32>
    %227 = arith.cmpi eq, %203, %226 : vector<8x128xi32>
    %c0_i32_47 = arith.constant 0 : i32
    %228 = vector.broadcast %c0_i32_47 : i32 to vector<8x128xi32>
    %229 = arith.cmpi eq, %204, %228 : vector<8x128xi32>
    %230 = arith.andi %227, %229 : vector<8x128xi1>
    %231 = arith.extui %230 : vector<8x128xi1> to vector<8x128xi32>
    %232 = arith.sitofp %231 : vector<8x128xi32> to vector<8x128xf32>
    %233 = vector.broadcast %97 : f32 to vector<8x128xf32>
    %234 = arith.mulf %233, %232 : vector<8x128xf32>
    %235 = arith.addf %225, %234 : vector<8x128xf32>
    %c1_i32_48 = arith.constant 1 : i32
    %236 = vector.broadcast %c1_i32_48 : i32 to vector<8x128xi32>
    %237 = arith.cmpi eq, %203, %236 : vector<8x128xi32>
    %c1_i32_49 = arith.constant 1 : i32
    %238 = vector.broadcast %c1_i32_49 : i32 to vector<8x128xi32>
    %239 = arith.cmpi eq, %204, %238 : vector<8x128xi32>
    %240 = arith.andi %237, %239 : vector<8x128xi1>
    %241 = arith.extui %240 : vector<8x128xi1> to vector<8x128xi32>
    %242 = arith.sitofp %241 : vector<8x128xi32> to vector<8x128xf32>
    %243 = vector.broadcast %102 : f32 to vector<8x128xf32>
    %244 = arith.mulf %243, %242 : vector<8x128xf32>
    %245 = arith.addf %235, %244 : vector<8x128xf32>
    %c2_i32 = arith.constant 2 : i32
    %246 = vector.broadcast %c2_i32 : i32 to vector<8x128xi32>
    %247 = arith.cmpi eq, %203, %246 : vector<8x128xi32>
    %c0_i32_50 = arith.constant 0 : i32
    %248 = vector.broadcast %c0_i32_50 : i32 to vector<8x128xi32>
    %249 = arith.cmpi eq, %204, %248 : vector<8x128xi32>
    %250 = arith.andi %247, %249 : vector<8x128xi1>
    %251 = arith.extui %250 : vector<8x128xi1> to vector<8x128xi32>
    %252 = arith.sitofp %251 : vector<8x128xi32> to vector<8x128xf32>
    %253 = vector.broadcast %147 : f32 to vector<8x128xf32>
    %254 = arith.mulf %253, %252 : vector<8x128xf32>
    %255 = arith.addf %245, %254 : vector<8x128xf32>
    %c2_i32_51 = arith.constant 2 : i32
    %256 = vector.broadcast %c2_i32_51 : i32 to vector<8x128xi32>
    %257 = arith.cmpi eq, %203, %256 : vector<8x128xi32>
    %c1_i32_52 = arith.constant 1 : i32
    %258 = vector.broadcast %c1_i32_52 : i32 to vector<8x128xi32>
    %259 = arith.cmpi eq, %204, %258 : vector<8x128xi32>
    %260 = arith.andi %257, %259 : vector<8x128xi1>
    %261 = arith.extui %260 : vector<8x128xi1> to vector<8x128xi32>
    %262 = arith.sitofp %261 : vector<8x128xi32> to vector<8x128xf32>
    %263 = vector.broadcast %152 : f32 to vector<8x128xf32>
    %264 = arith.mulf %263, %262 : vector<8x128xf32>
    %265 = arith.addf %255, %264 : vector<8x128xf32>
    %c3_i32_53 = arith.constant 3 : i32
    %266 = vector.broadcast %c3_i32_53 : i32 to vector<8x128xi32>
    %267 = arith.cmpi eq, %203, %266 : vector<8x128xi32>
    %c0_i32_54 = arith.constant 0 : i32
    %268 = vector.broadcast %c0_i32_54 : i32 to vector<8x128xi32>
    %269 = arith.cmpi eq, %204, %268 : vector<8x128xi32>
    %270 = arith.andi %267, %269 : vector<8x128xi1>
    %271 = arith.extui %270 : vector<8x128xi1> to vector<8x128xi32>
    %272 = arith.sitofp %271 : vector<8x128xi32> to vector<8x128xf32>
    %273 = vector.broadcast %197 : f32 to vector<8x128xf32>
    %274 = arith.mulf %273, %272 : vector<8x128xf32>
    %275 = arith.addf %265, %274 : vector<8x128xf32>
    %c3_i32_55 = arith.constant 3 : i32
    %276 = vector.broadcast %c3_i32_55 : i32 to vector<8x128xi32>
    %277 = arith.cmpi eq, %203, %276 : vector<8x128xi32>
    %c1_i32_56 = arith.constant 1 : i32
    %278 = vector.broadcast %c1_i32_56 : i32 to vector<8x128xi32>
    %279 = arith.cmpi eq, %204, %278 : vector<8x128xi32>
    %280 = arith.andi %277, %279 : vector<8x128xi1>
    %281 = arith.extui %280 : vector<8x128xi1> to vector<8x128xi32>
    %282 = arith.sitofp %281 : vector<8x128xi32> to vector<8x128xf32>
    %283 = vector.broadcast %202 : f32 to vector<8x128xf32>
    %284 = arith.mulf %283, %282 : vector<8x128xf32>
    %285 = arith.addf %275, %284 : vector<8x128xf32>
    %c0_57 = arith.constant 0 : index
    %c0_58 = arith.constant 0 : index
    %c0_59 = arith.constant 0 : index
    %286 = vector.load %arg4[%c0_57, %c0_58, %c0_59] : memref<1x8x128xf32, #tpu.memory_space<vmem>>, vector<1x8x128xf32>
    %287 = vector.shape_cast %286 : vector<1x8x128xf32> to vector<8x128xf32>
    %288 = arith.addf %287, %285 : vector<8x128xf32>
    %c0_60 = arith.constant 0 : index
    %c0_61 = arith.constant 0 : index
    %c0_62 = arith.constant 0 : index
    %289 = vector.load %arg4[%c0_60, %c0_61, %c0_62] : memref<1x8x128xf32, #tpu.memory_space<vmem>>, vector<1x8x128xf32>
    %290 = vector.shape_cast %289 : vector<1x8x128xf32> to vector<8x128xf32>
    %291 = vector.shape_cast %288 : vector<8x128xf32> to vector<1x8x128xf32>
    tpu.vector_store %arg4[%c0_60, %c0_61, %c0_62], %291 {strides = array<i32>} : memref<1x8x128xf32, #tpu.memory_space<vmem>>, vector<1x8x128xf32>,
    return
  }
  func.func @transform_0(%arg0: i32, %arg1: i32) -> (i32, i32, i32) {
    %c1_i32 = arith.constant 1 : i32
    %0 = arith.muli %arg0, %c1_i32 : i32
    %1 = arith.addi %0, %arg1 : i32
    %c0_i32 = arith.constant 0 : i32
    %c0_i32_0 = arith.constant 0 : i32
    %c0_i32_1 = arith.constant 0 : i32
    return %1, %c0_i32, %c0_i32_0 : i32, i32, i32
  }
  func.func @transform_1(%arg0: i32, %arg1: i32) -> (i32, i32, i32) {
    %c1_i32 = arith.constant 1 : i32
    %0 = arith.muli %arg0, %c1_i32 : i32
    %1 = arith.addi %0, %arg1 : i32
    %c0_i32 = arith.constant 0 : i32
    %c0_i32_0 = arith.constant 0 : i32
    %c0_i32_1 = arith.constant 0 : i32
    return %1, %c0_i32, %c0_i32_0 : i32, i32, i32
  }
  func.func @transform_2(%arg0: i32, %arg1: i32) -> (i32, i32, i32) {
    %c0_i32 = arith.constant 0 : i32
    %c0_i32_0 = arith.constant 0 : i32
    %c0_i32_1 = arith.constant 0 : i32
    return %arg0, %c0_i32, %c0_i32_0 : i32, i32, i32
  }
}

</mosaic_0001>

<llo_original>
// kernel: _msgil_norm_loss_impl.1
$region0: #{_msgil_norm_loss_impl.1}
  #allocation0 [shape = 'u32[]', space=smem, size = 0x4, offset = 0x4, fixed_abs, tag = 'smem constant byte address 0x4 - core index']
  #allocation1 [shape = 'u32[72,128]{1,0:T(1,128)}', space=vmem, size = 0x9000, scoped, tag = 'internal scratch']
  %s0 = inlined_call_operand.hbm [shape: f32[3,32,32], index: 0, kind: input, shape index: {}]
  %s1 = inlined_call_operand.hbm [shape: f32[3,32,32], index: 1, kind: input, shape index: {}]
  %s2 = inlined_call_operand.vmem [shape: f32[1,8,128], index: 2, kind: output, shape index: {}]
  %s3 = sld [smem:[#allocation0]]
  $region30: #{_msgil_norm_loss_impl.1} parent=0
    _
  %s5 = ssub.s32 1, %s3
  %s6 = scalar_select 0, %s5, %s3
  $region1: #{_msgil_norm_loss_impl.1} parent=0
    #allocation2 [shape = 'u8[49152]{0}', space=vmem, size = 0xc000, scoped, tag = 'input window, operand 0, single buffered']
    #allocation3 [shape = 's32[1]{0}', space=sflag, size = 0x4, scoped, tag = 'scoped memory for _msgil_norm_loss_impl.1']
    #allocation4 [shape = 'u8[49152]{0}', space=vmem, size = 0xc000, scoped, tag = 'input window, operand 1, single buffered']
    #allocation5 [shape = 's32[1]{0}', space=sflag, size = 0x4, scoped, tag = 'scoped memory for _msgil_norm_loss_impl.1']
    %7 = vsyncpa [#allocation3], 0
    %8 = vsyncpa [#allocation5], 0
    // Predicated region
    $region2: #{_msgil_norm_loss_impl.1} parent=1 // pred_check
      _
    $region3: #{_msgil_norm_loss_impl.1} parent=1 // pred_check_branch
      %10 = sbr.rel (0) target = $region5
    $region4: #{_msgil_norm_loss_impl.1} parent=1 // pred_region
      %s11 = sadd.s32 0, 0
      %s12 = smul.u32 3, %s11
      %14 = vsyncadd [#allocation3], 0
      %s15 = smul.addr %s12, 4
      %s16 = smul.addr %s15, 8
      %s17 = scalar_lea.hbm %s0, %s16
      %s18 = sshll.u32 %s17, 4
      %s19 = int_to_ptr.hbm [resolvable:$true] %s18
      %s20 = sshll.u32 [#allocation2], 4
      %s21 = int_to_ptr.vmem [resolvable:$true] %s20
      %26 = dma.hbm_to_vmem [thread:$0]  %s19, 1536, %s21, [#allocation3], 128, 128, 8
    $region5: #{_msgil_norm_loss_impl.1} parent=1 // pred_fallthru
      _
    // Predicated region
    $region6: #{_msgil_norm_loss_impl.1} parent=1 // pred_check
      _
    $region7: #{_msgil_norm_loss_impl.1} parent=1 // pred_check_branch
      %28 = sbr.rel (0) target = $region9
    $region8: #{_msgil_norm_loss_impl.1} parent=1 // pred_region
      %s29 = sadd.s32 0, 0
      %s30 = smul.u32 3, %s29
      %32 = vsyncadd [#allocation5], 0
      %s33 = smul.addr %s30, 4
      %s34 = smul.addr %s33, 8
      %s35 = scalar_lea.hbm %s1, %s34
      %s36 = sshll.u32 %s35, 4
      %s37 = int_to_ptr.hbm [resolvable:$true] %s36
      %s38 = sshll.u32 [#allocation4], 4
      %s39 = int_to_ptr.vmem [resolvable:$true] %s38
      %44 = dma.hbm_to_vmem [thread:$0]  %s37, 1536, %s39, [#allocation5], 128, 128, 8
    $region9: #{_msgil_norm_loss_impl.1} parent=1 // pred_fallthru
      _
    // Predicated region
    $region10: #{_msgil_norm_loss_impl.1} parent=1 // pred_check
      _
    $region11: #{_msgil_norm_loss_impl.1} parent=1 // pred_check_branch
      %46 = sbr.rel (0) target = $region13
    $region12: #{_msgil_norm_loss_impl.1} parent=1 // pred_region
      %48 = dma.done [#allocation3], 1536
    $region13: #{_msgil_norm_loss_impl.1} parent=1 // pred_fallthru
      _
    // Predicated region
    $region14: #{_msgil_norm_loss_impl.1} parent=1 // pred_check
      _
    $region15: #{_msgil_norm_loss_impl.1} parent=1 // pred_check_branch
      %50 = sbr.rel (0) target = $region17
    $region16: #{_msgil_norm_loss_impl.1} parent=1 // pred_region
      %52 = dma.done [#allocation5], 1536
    $region17: #{_msgil_norm_loss_impl.1} parent=1 // pred_fallthru
      _
    %s53 = sadd.s32 0, 0
    %s54 = smul.u32 3, %s53
    %s55 = sadd.s32 0, 0
    %s56 = smul.u32 3, %s55
    %p57 = scmp.eq.s32.totalorder 0, 0
    // Predicated region
    $region18: #{_msgil_norm_loss_impl.1} parent=1 // pred_check
      %p58 = pneg %p57
    $region19: #{_msgil_norm_loss_impl.1} parent=1 // pred_check_branch
      %60 = sbr.rel (%p58) target = $region21
    $region20: #{_msgil_norm_loss_impl.1} parent=1 // pred_region
      %61 = vst [vmem:[%s2] sm:$0xff] 0.0
    $region21: #{_msgil_norm_loss_impl.1} parent=1 // pred_fallthru
      _
    %v62 = vld [vmem:[#allocation2] sm:$0xff]
    %v63 = vld [vmem:[#allocation2 + $0x8] sm:$0xff]
    %v64 = vld [vmem:[#allocation2 + $0x10] sm:$0xff]
    %v65 = vld [vmem:[#allocation2 + $0x18] sm:$0xff]
    %v66 = vld [vmem:[#allocation2 + $0x20] sm:$0xff]
    %v67 = vld [vmem:[#allocation2 + $0x28] sm:$0xff]
    %v68 = vld [vmem:[#allocation2 + $0x30] sm:$0xff]
    %v69 = vld [vmem:[#allocation2 + $0x38] sm:$0xff]
    %v70 = vld [vmem:[#allocation2 + $0x40] sm:$0xff]
    %v71 = vld [vmem:[#allocation2 + $0x48] sm:$0xff]
    %v72 = vld [vmem:[#allocation2 + $0x50] sm:$0xff]
    %v73 = vld [vmem:[#allocation2 + $0x58] sm:$0xff]
    %v74 = vld [vmem:[#allocation4] sm:$0xff]
    %v75 = vld [vmem:[#allocation4 + $0x8] sm:$0xff]
    %v76 = vld [vmem:[#allocation4 + $0x10] sm:$0xff]
    %v77 = vld [vmem:[#allocation4 + $0x18] sm:$0xff]
    %v78 = vld [vmem:[#allocation4 + $0x20] sm:$0xff]
    %v79 = vld [vmem:[#allocation4 + $0x28] sm:$0xff]
    %v80 = vld [vmem:[#allocation4 + $0x30] sm:$0xff]
    %v81 = vld [vmem:[#allocation4 + $0x38] sm:$0xff]
    %v82 = vld [vmem:[#allocation4 + $0x40] sm:$0xff]
    %v83 = vld [vmem:[#allocation4 + $0x48] sm:$0xff]
    %v84 = vld [vmem:[#allocation4 + $0x50] sm:$0xff]
    %v85 = vld [vmem:[#allocation4 + $0x58] sm:$0xff]
    %vm86 = vcmp.gt.f32.partialorder %v74, 1e-06
    %vm87 = vcmp.gt.f32.partialorder %v75, 1e-06
    %vm88 = vcmp.gt.f32.partialorder %v76, 1e-06
    %vm89 = vcmp.gt.f32.partialorder %v77, 1e-06
    %vm90 = vcmp.gt.f32.partialorder %v78, 1e-06
    %vm91 = vcmp.gt.f32.partialorder %v79, 1e-06
    %vm92 = vcmp.gt.f32.partialorder %v80, 1e-06
    %vm93 = vcmp.gt.f32.partialorder %v81, 1e-06
    %vm94 = vcmp.gt.f32.partialorder %v82, 1e-06
    %vm95 = vcmp.gt.f32.partialorder %v83, 1e-06
    %vm96 = vcmp.gt.f32.partialorder %v84, 1e-06
    %vm97 = vcmp.gt.f32.partialorder %v85, 1e-06
    %v98 = vsel %vm86, 1, 0
    %v99 = vsel %vm87, 1, 0
    %v100 = vsel %vm88, 1, 0
    %v101 = vsel %vm89, 1, 0
    %v102 = vsel %vm90, 1, 0
    %v103 = vsel %vm91, 1, 0
    %v104 = vsel %vm92, 1, 0
    %v105 = vsel %vm93, 1, 0
    %v106 = vsel %vm94, 1, 0
    %v107 = vsel %vm95, 1, 0
    %v108 = vsel %vm96, 1, 0
    %v109 = vsel %vm97, 1, 0
    %v110 = vcvt.s32.f32 %v98
    %v111 = vcvt.s32.f32 %v99
    %v112 = vcvt.s32.f32 %v100
    %v113 = vcvt.s32.f32 %v101
    %v114 = vcvt.s32.f32 %v102
    %v115 = vcvt.s32.f32 %v103
    %v116 = vcvt.s32.f32 %v104
    %v117 = vcvt.s32.f32 %v105
    %v118 = vcvt.s32.f32 %v106
    %v119 = vcvt.s32.f32 %v107
    %v120 = vcvt.s32.f32 %v108
    %v121 = vcvt.s32.f32 %v109
    %v122 = vmax.f32 %v62, 1e-06
    %v123 = vmax.f32 %v63, 1e-06
    %v124 = vmax.f32 %v64, 1e-06
    %v125 = vmax.f32 %v65, 1e-06
    %v126 = vmax.f32 %v66, 1e-06
    %v127 = vmax.f32 %v67, 1e-06
    %v128 = vmax.f32 %v68, 1e-06
    %v129 = vmax.f32 %v69, 1e-06
    %v130 = vmax.f32 %v70, 1e-06
    %v131 = vmax.f32 %v71, 1e-06
    %v132 = vmax.f32 %v72, 1e-06
    %v133 = vmax.f32 %v73, 1e-06
    %v134 = vmax.f32 %v74, 1e-06
    %v135 = vmax.f32 %v75, 1e-06
    %v136 = vmax.f32 %v76, 1e-06
    %v137 = vmax.f32 %v77, 1e-06
    %v138 = vmax.f32 %v78, 1e-06
    %v139 = vmax.f32 %v79, 1e-06
    %v140 = vmax.f32 %v80, 1e-06
    %v141 = vmax.f32 %v81, 1e-06
    %v142 = vmax.f32 %v82, 1e-06
    %v143 = vmax.f32 %v83, 1e-06
    %v144 = vmax.f32 %v84, 1e-06
    %v145 = vmax.f32 %v85, 1e-06
    %v146 = vrcp.pop %v134
    %v147 = vmul.f32 %v134, %v146
    %v148 = vsub.f32 1.0, %v147
    %v149 = vmul.f32 %v146, %v148
    %v150 = vadd.f32 %v146, %v149
    %vm151 = vweird.f32 %v134
    %vm152 = vweird.f32 %v146
    %vm153 = vmor %vm151, %vm152
    %v154 = vsel %vm153, %v146, %v150
    %v155 = vand.u32 2147483647, %v134
    %vm156 = vcmp.eq.f32.partialorder %v155, 8.507059e+37
    %v157 = vand.u32 %v134, 2147483648
    %v158 = vor.u32 1.1754944e-38, %v157
    %v159 = vsel %vm156, %v158, %v154
    %v160 = vmul.f32 %v122, %v159
    %v161 = vrcp.pop %v135
    %v162 = vmul.f32 %v135, %v161
    %v163 = vsub.f32 1.0, %v162
    %v164 = vmul.f32 %v161, %v163
    %v165 = vadd.f32 %v161, %v164
    %vm166 = vweird.f32 %v135
    %vm167 = vweird.f32 %v161
    %vm168 = vmor %vm166, %vm167
    %v169 = vsel %vm168, %v161, %v165
    %v170 = vand.u32 2147483647, %v135
    %vm171 = vcmp.eq.f32.partialorder %v170, 8.507059e+37
    %v172 = vand.u32 %v135, 2147483648
    %v173 = vor.u32 1.1754944e-38, %v172
    %v174 = vsel %vm171, %v173, %v169
    %v175 = vmul.f32 %v123, %v174
    %v176 = vrcp.pop %v136
    %v177 = vmul.f32 %v136, %v176
    %v178 = vsub.f32 1.0, %v177
    %v179 = vmul.f32 %v176, %v178
    %v180 = vadd.f32 %v176, %v179
    %vm181 = vweird.f32 %v136
    %vm182 = vweird.f32 %v176
    %vm183 = vmor %vm181, %vm182
    %v184 = vsel %vm183, %v176, %v180
    %v185 = vand.u32 2147483647, %v136
    %vm186 = vcmp.eq.f32.partialorder %v185, 8.507059e+37
    %v187 = vand.u32 %v136, 2147483648
    %v188 = vor.u32 1.1754944e-38, %v187
    %v189 = vsel %vm186, %v188, %v184
    %v190 = vmul.f32 %v124, %v189
    %v191 = vrcp.pop %v137
    %v192 = vmul.f32 %v137, %v191
    %v193 = vsub.f32 1.0, %v192
    %v194 = vmul.f32 %v191, %v193
    %v195 = vadd.f32 %v191, %v194
    %vm196 = vweird.f32 %v137
    %vm197 = vweird.f32 %v191
    %vm198 = vmor %vm196, %vm197
    %v199 = vsel %vm198, %v191, %v195
    %v200 = vand.u32 2147483647, %v137
    %vm201 = vcmp.eq.f32.partialorder %v200, 8.507059e+37
    %v202 = vand.u32 %v137, 2147483648
    %v203 = vor.u32 1.1754944e-38, %v202
    %v204 = vsel %vm201, %v203, %v199
    %v205 = vmul.f32 %v125, %v204
    %v206 = vrcp.pop %v138
    %v207 = vmul.f32 %v138, %v206
    %v208 = vsub.f32 1.0, %v207
    %v209 = vmul.f32 %v206, %v208
    %v210 = vadd.f32 %v206, %v209
    %vm211 = vweird.f32 %v138
    %vm212 = vweird.f32 %v206
    %vm213 = vmor %vm211, %vm212
    %v214 = vsel %vm213, %v206, %v210
    %v215 = vand.u32 2147483647, %v138
    %vm216 = vcmp.eq.f32.partialorder %v215, 8.507059e+37
    %v217 = vand.u32 %v138, 2147483648
    %v218 = vor.u32 1.1754944e-38, %v217
    %v219 = vsel %vm216, %v218, %v214
    %v220 = vmul.f32 %v126, %v219
    %v221 = vrcp.pop %v139
    %v222 = vmul.f32 %v139, %v221
    %v223 = vsub.f32 1.0, %v222
    %v224 = vmul.f32 %v221, %v223
    %v225 = vadd.f32 %v221, %v224
    %vm226 = vweird.f32 %v139
    %vm227 = vweird.f32 %v221
    %vm228 = vmor %vm226, %vm227
    %v229 = vsel %vm228, %v221, %v225
    %v230 = vand.u32 2147483647, %v139
    %vm231 = vcmp.eq.f32.partialorder %v230, 8.507059e+37
    %v232 = vand.u32 %v139, 2147483648
    %v233 = vor.u32 1.1754944e-38, %v232
    %v234 = vsel %vm231, %v233, %v229
    %v235 = vmul.f32 %v127, %v234
    %v236 = vrcp.pop %v140
    %v237 = vmul.f32 %v140, %v236
    %v238 = vsub.f32 1.0, %v237
    %v239 = vmul.f32 %v236, %v238
    %v240 = vadd.f32 %v236, %v239
    %vm241 = vweird.f32 %v140
    %vm242 = vweird.f32 %v236
    %vm243 = vmor %vm241, %vm242
    %v244 = vsel %vm243, %v236, %v240
    %v245 = vand.u32 2147483647, %v140
    %vm246 = vcmp.eq.f32.partialorder %v245, 8.507059e+37
    %v247 = vand.u32 %v140, 2147483648
    %v248 = vor.u32 1.1754944e-38, %v247
    %v249 = vsel %vm246, %v248, %v244
    %v250 = vmul.f32 %v128, %v249
    %v251 = vrcp.pop %v141
    %v252 = vmul.f32 %v141, %v251
    %v253 = vsub.f32 1.0, %v252
    %v254 = vmul.f32 %v251, %v253
    %v255 = vadd.f32 %v251, %v254
    %vm256 = vweird.f32 %v141
    %vm257 = vweird.f32 %v251
    %vm258 = vmor %vm256, %vm257
    %v259 = vsel %vm258, %v251, %v255
    %v260 = vand.u32 2147483647, %v141
    %vm261 = vcmp.eq.f32.partialorder %v260, 8.507059e+37
    %v262 = vand.u32 %v141, 2147483648
    %v263 = vor.u32 1.1754944e-38, %v262
    %v264 = vsel %vm261, %v263, %v259
    %v265 = vmul.f32 %v129, %v264
    %v266 = vrcp.pop %v142
    %v267 = vmul.f32 %v142, %v266
    %v268 = vsub.f32 1.0, %v267
    %v269 = vmul.f32 %v266, %v268
    %v270 = vadd.f32 %v266, %v269
    %vm271 = vweird.f32 %v142
    %vm272 = vweird.f32 %v266
    %vm273 = vmor %vm271, %vm272
    %v274 = vsel %vm273, %v266, %v270
    %v275 = vand.u32 2147483647, %v142
    %vm276 = vcmp.eq.f32.partialorder %v275, 8.507059e+37
    %v277 = vand.u32 %v142, 2147483648
    %v278 = vor.u32 1.1754944e-38, %v277
    %v279 = vsel %vm276, %v278, %v274
    %v280 = vmul.f32 %v130, %v279
    %v281 = vrcp.pop %v143
    %v282 = vmul.f32 %v143, %v281
    %v283 = vsub.f32 1.0, %v282
    %v284 = vmul.f32 %v281, %v283
    %v285 = vadd.f32 %v281, %v284
    %vm286 = vweird.f32 %v143
    %vm287 = vweird.f32 %v281
    %vm288 = vmor %vm286, %vm287
    %v289 = vsel %vm288, %v281, %v285
    %v290 = vand.u32 2147483647, %v143
    %vm291 = vcmp.eq.f32.partialorder %v290, 8.507059e+37
    %v292 = vand.u32 %v143, 2147483648
    %v293 = vor.u32 1.1754944e-38, %v292
    %v294 = vsel %vm291, %v293, %v289
    %v295 = vmul.f32 %v131, %v294
    %v296 = vrcp.pop %v144
    %v297 = vmul.f32 %v144, %v296
    %v298 = vsub.f32 1.0, %v297
    %v299 = vmul.f32 %v296, %v298
    %v300 = vadd.f32 %v296, %v299
    %vm301 = vweird.f32 %v144
    %vm302 = vweird.f32 %v296
    %vm303 = vmor %vm301, %vm302
    %v304 = vsel %vm303, %v296, %v300
    %v305 = vand.u32 2147483647, %v144
    %vm306 = vcmp.eq.f32.partialorder %v305, 8.507059e+37
    %v307 = vand.u32 %v144, 2147483648
    %v308 = vor.u32 1.1754944e-38, %v307
    %v309 = vsel %vm306, %v308, %v304
    %v310 = vmul.f32 %v132, %v309
    %v311 = vrcp.pop %v145
    %v312 = vmul.f32 %v145, %v311
    %v313 = vsub.f32 1.0, %v312
    %v314 = vmul.f32 %v311, %v313
    %v315 = vadd.f32 %v311, %v314
    %vm316 = vweird.f32 %v145
    %vm317 = vweird.f32 %v311
    %vm318 = vmor %vm316, %vm317
    %v319 = vsel %vm318, %v311, %v315
    %v320 = vand.u32 2147483647, %v145
    %vm321 = vcmp.eq.f32.partialorder %v320, 8.507059e+37
    %v322 = vand.u32 %v145, 2147483648
    %v323 = vor.u32 1.1754944e-38, %v322
    %v324 = vsel %vm321, %v323, %v319
    %v325 = vmul.f32 %v133, %v324
    %v326 = vlog2.pop %v160
    %v327 = vmul.f32 %v326, 0.6931472
    %v328 = vlog2.pop %v175
    %v329 = vmul.f32 %v328, 0.6931472
    %v330 = vlog2.pop %v190
    %v331 = vmul.f32 %v330, 0.6931472
    %v332 = vlog2.pop %v205
    %v333 = vmul.f32 %v332, 0.6931472
    %v334 = vlog2.pop %v220
    %v335 = vmul.f32 %v334, 0.6931472
    %v336 = vlog2.pop %v235
    %v337 = vmul.f32 %v336, 0.6931472
    %v338 = vlog2.pop %v250
    %v339 = vmul.f32 %v338, 0.6931472
    %v340 = vlog2.pop %v265
    %v341 = vmul.f32 %v340, 0.6931472
    %v342 = vlog2.pop %v280
    %v343 = vmul.f32 %v342, 0.6931472
    %v344 = vlog2.pop %v295
    %v345 = vmul.f32 %v344, 0.6931472
    %v346 = vlog2.pop %v310
    %v347 = vmul.f32 %v346, 0.6931472
    %v348 = vlog2.pop %v325
    %v349 = vmul.f32 %v348, 0.6931472
    %v350 = vlaneseq
    %v351 = vshrl.u32 %v350, 7
    %v352 = vadd.s32 %v351, 8
    %v353 = vadd.s32 %v351, 16
    %v354 = vadd.s32 %v351, 24
    %v355 = vlaneseq
    %v356 = vand.u32 %v355, 127
    %vm369 = vcmask 1045504
    %v370 = vrot.slane %v110, 2
    %v371 = vrot.slane %v111, 2
    %v372 = vsel %vm369, %v370, %v371
    %v373 = vrot.slane %v112, 2
    %v374 = vsel %vm369, %v371, %v373
    %v375 = vrot.slane %v113, 2
    %v376 = vsel %vm369, %v373, %v375
    %v377 = vrot.slane %v114, 2
    %v378 = vrot.slane %v115, 2
    %v379 = vsel %vm369, %v377, %v378
    %v380 = vrot.slane %v116, 2
    %v381 = vsel %vm369, %v378, %v380
    %v382 = vrot.slane %v117, 2
    %v383 = vsel %vm369, %v380, %v382
    %v384 = vrot.slane %v118, 2
    %v385 = vrot.slane %v119, 2
    %v386 = vsel %vm369, %v384, %v385
    %v387 = vrot.slane %v120, 2
    %v388 = vsel %vm369, %v385, %v387
    %v389 = vrot.slane %v121, 2
    %v390 = vsel %vm369, %v387, %v389
    %v403 = vmul.f32 %v110, %v372
    %v404 = vmul.f32 %v111, %v374
    %v405 = vmul.f32 %v112, %v376
    %v406 = vmul.f32 %v113, %v375
    %v407 = vmul.f32 %v114, %v379
    %v408 = vmul.f32 %v115, %v381
    %v409 = vmul.f32 %v116, %v383
    %v410 = vmul.f32 %v117, %v382
    %v411 = vmul.f32 %v118, %v386
    %v412 = vmul.f32 %v119, %v388
    %v413 = vmul.f32 %v120, %v390
    %v414 = vmul.f32 %v121, %v389
    %v427 = vrot.slane %v327, 2
    %v428 = vrot.slane %v329, 2
    %v429 = vsel %vm369, %v427, %v428
    %v430 = vrot.slane %v331, 2
    %v431 = vsel %vm369, %v428, %v430
    %v432 = vrot.slane %v333, 2
    %v433 = vsel %vm369, %v430, %v432
    %v434 = vrot.slane %v335, 2
    %v435 = vrot.slane %v337, 2
    %v436 = vsel %vm369, %v434, %v435
    %v437 = vrot.slane %v339, 2
    %v438 = vsel %vm369, %v435, %v437
    %v439 = vrot.slane %v341, 2
    %v440 = vsel %vm369, %v437, %v439
    %v441 = vrot.slane %v343, 2
    %v442 = vrot.slane %v345, 2
    %v443 = vsel %vm369, %v441, %v442
    %v444 = vrot.slane %v347, 2
    %v445 = vsel %vm369, %v442, %v444
    %v446 = vrot.slane %v349, 2
    %v447 = vsel %vm369, %v444, %v446
    %v460 = vsub.f32 %v327, %v429
    %v461 = vsub.f32 %v329, %v431
    %v462 = vsub.f32 %v331, %v433
    %v463 = vsub.f32 %v333, %v432
    %v464 = vsub.f32 %v335, %v436
    %v465 = vsub.f32 %v337, %v438
    %v466 = vsub.f32 %v339, %v440
    %v467 = vsub.f32 %v341, %v439
    %v468 = vsub.f32 %v343, %v443
    %v469 = vsub.f32 %v345, %v445
    %v470 = vsub.f32 %v347, %v447
    %v471 = vsub.f32 %v349, %v446
    %v472 = vand.u32 2147483647, %v460
    %v473 = vand.u32 2147483647, %v461
    %v474 = vand.u32 2147483647, %v462
    %v475 = vand.u32 2147483647, %v463
    %v476 = vand.u32 2147483647, %v464
    %v477 = vand.u32 2147483647, %v465
    %v478 = vand.u32 2147483647, %v466
    %v479 = vand.u32 2147483647, %v467
    %v480 = vand.u32 2147483647, %v468
    %v481 = vand.u32 2147483647, %v469
    %v482 = vand.u32 2147483647, %v470
    %v483 = vand.u32 2147483647, %v471
    %v484 = vmul.f32 %v472, %v403
    %v485 = vmul.f32 %v473, %v404
    %v486 = vmul.f32 %v474, %v405
    %v487 = vmul.f32 %v475, %v406
    %v488 = vmul.f32 %v476, %v407
    %v489 = vmul.f32 %v477, %v408
    %v490 = vmul.f32 %v478, %v409
    %v491 = vmul.f32 %v479, %v410
    %v492 = vmul.f32 %v480, %v411
    %v493 = vmul.f32 %v481, %v412
    %v494 = vmul.f32 %v482, %v413
    %v495 = vmul.f32 %v483, %v414
    %vm496 = vcmask 261120
    %v497 = vsel %vm496, %v484, 0.0
    %v498 = vsel %vm496, %v485, 0.0
    %v499 = vadd.f32 %v497, %v498
    %v500 = vsel %vm496, %v486, 0.0
    %v501 = vadd.f32 %v499, %v500
    %vm502 = vcmask 259072
    %v503 = vsel %vm502, %v487, 0.0
    %v504 = vadd.f32 %v501, %v503
    %v505 = vsel %vm496, %v488, 0.0
    %v506 = vadd.f32 %v504, %v505
    %v507 = vsel %vm496, %v489, 0.0
    %v508 = vadd.f32 %v506, %v507
    %v509 = vsel %vm496, %v490, 0.0
    %v510 = vadd.f32 %v508, %v509
    %v511 = vsel %vm502, %v491, 0.0
    %v512 = vadd.f32 %v510, %v511
    %v513 = vsel %vm496, %v492, 0.0
    %v514 = vadd.f32 %v512, %v513
    %v515 = vsel %vm496, %v493, 0.0
    %v516 = vadd.f32 %v514, %v515
    %v517 = vsel %vm496, %v494, 0.0
    %v518 = vadd.f32 %v516, %v517
    %v519 = vsel %vm502, %v495, 0.0
    %v520 = vadd.f32 %v518, %v519
    %521 = vadd.xlane.f32.xlu0 %v520
    %v522 = vpop.xlane.xlu0 %521
    %v523 = vrot.slane %v522, 4
    %v524 = vadd.f32 %v522, %v523
    %v525 = vrot.slane %v524, 2
    %v526 = vadd.f32 %v524, %v525
    %v527 = vrot.slane %v526, 1
    %v528 = vadd.f32 %v526, %v527
    %s529 = vtos %v528
    %s530 = sadd.f32 %s529, 0.0
    %v531 = vsel %vm496, %v403, 0.0
    %v532 = vsel %vm496, %v404, 0.0
    %v533 = vadd.f32 %v531, %v532
    %v534 = vsel %vm496, %v405, 0.0
    %v535 = vadd.f32 %v533, %v534
    %v536 = vsel %vm502, %v406, 0.0
    %v537 = vadd.f32 %v535, %v536
    %v538 = vsel %vm496, %v407, 0.0
    %v539 = vadd.f32 %v537, %v538
    %v540 = vsel %vm496, %v408, 0.0
    %v541 = vadd.f32 %v539, %v540
    %v542 = vsel %vm496, %v409, 0.0
    %v543 = vadd.f32 %v541, %v542
    %v544 = vsel %vm502, %v410, 0.0
    %v545 = vadd.f32 %v543, %v544
    %v546 = vsel %vm496, %v411, 0.0
    %v547 = vadd.f32 %v545, %v546
    %v548 = vsel %vm496, %v412, 0.0
    %v549 = vadd.f32 %v547, %v548
    %v550 = vsel %vm496, %v413, 0.0
    %v551 = vadd.f32 %v549, %v550
    %v552 = vsel %vm502, %v414, 0.0
    %v553 = vadd.f32 %v551, %v552
    %554 = vadd.xlane.f32.xlu0 %v553
    %v555 = vpop.xlane.xlu0 %554
    %v556 = vrot.slane %v555, 4
    %v557 = vadd.f32 %v555, %v556
    %v558 = vrot.slane %v557, 2
    %v559 = vadd.f32 %v557, %v558
    %v560 = vrot.slane %v559, 1
    %v561 = vadd.f32 %v559, %v560
    %s562 = vtos %v561
    %s563 = sadd.f32 %s562, 0.0
    %564 = vrot.lane.b32.xlu0 %v110, 126
    %v565 = vpop.permute.xlu0 %564
    %566 = vrot.lane.b32.xlu0 %v111, 126
    %v567 = vpop.permute.xlu0 %566
    %568 = vrot.lane.b32.xlu0 %v112, 126
    %v569 = vpop.permute.xlu0 %568
    %570 = vrot.lane.b32.xlu0 %v113, 126
    %v571 = vpop.permute.xlu0 %570
    %572 = vrot.lane.b32.xlu0 %v114, 126
    %v573 = vpop.permute.xlu0 %572
    %574 = vrot.lane.b32.xlu0 %v115, 126
    %v575 = vpop.permute.xlu0 %574
    %576 = vrot.lane.b32.xlu0 %v116, 126
    %v577 = vpop.permute.xlu0 %576
    %578 = vrot.lane.b32.xlu0 %v117, 126
    %v579 = vpop.permute.xlu0 %578
    %580 = vrot.lane.b32.xlu0 %v118, 126
    %v581 = vpop.permute.xlu0 %580
    %582 = vrot.lane.b32.xlu0 %v119, 126
    %v583 = vpop.permute.xlu0 %582
    %584 = vrot.lane.b32.xlu0 %v120, 126
    %v585 = vpop.permute.xlu0 %584
    %586 = vrot.lane.b32.xlu0 %v121, 126
    %v587 = vpop.permute.xlu0 %586
    %v600 = vmul.f32 %v110, %v565
    %v601 = vmul.f32 %v111, %v567
    %v602 = vmul.f32 %v112, %v569
    %v603 = vmul.f32 %v113, %v571
    %v604 = vmul.f32 %v114, %v573
    %v605 = vmul.f32 %v115, %v575
    %v606 = vmul.f32 %v116, %v577
    %v607 = vmul.f32 %v117, %v579
    %v608 = vmul.f32 %v118, %v581
    %v609 = vmul.f32 %v119, %v583
    %v610 = vmul.f32 %v120, %v585
    %v611 = vmul.f32 %v121, %v587
    %612 = vrot.lane.b32.xlu0 %v327, 126
    %v613 = vpop.permute.xlu0 %612
    %614 = vrot.lane.b32.xlu0 %v329, 126
    %v615 = vpop.permute.xlu0 %614
    %616 = vrot.lane.b32.xlu0 %v331, 126
    %v617 = vpop.permute.xlu0 %616
    %618 = vrot.lane.b32.xlu0 %v333, 126
    %v619 = vpop.permute.xlu0 %618
    %620 = vrot.lane.b32.xlu0 %v335, 126
    %v621 = vpop.permute.xlu0 %620
    %622 = vrot.lane.b32.xlu0 %v337, 126
    %v623 = vpop.permute.xlu0 %622
    %624 = vrot.lane.b32.xlu0 %v339, 126
    %v625 = vpop.permute.xlu0 %624
    %626 = vrot.lane.b32.xlu0 %v341, 126
    %v627 = vpop.permute.xlu0 %626
    %628 = vrot.lane.b32.xlu0 %v343, 126
    %v629 = vpop.permute.xlu0 %628
    %630 = vrot.lane.b32.xlu0 %v345, 126
    %v631 = vpop.permute.xlu0 %630
    %632 = vrot.lane.b32.xlu0 %v347, 126
    %v633 = vpop.permute.xlu0 %632
    %634 = vrot.lane.b32.xlu0 %v349, 126
    %v635 = vpop.permute.xlu0 %634
    %v648 = vsub.f32 %v327, %v613
    %v649 = vsub.f32 %v329, %v615
    %v650 = vsub.f32 %v331, %v617
    %v651 = vsub.f32 %v333, %v619
    %v652 = vsub.f32 %v335, %v621
    %v653 = vsub.f32 %v337, %v623
    %v654 = vsub.f32 %v339, %v625
    %v655 = vsub.f32 %v341, %v627
    %v656 = vsub.f32 %v343, %v629
    %v657 = vsub.f32 %v345, %v631
    %v658 = vsub.f32 %v347, %v633
    %v659 = vsub.f32 %v349, %v635
    %v660 = vand.u32 2147483647, %v648
    %v661 = vand.u32 2147483647, %v649
    %v662 = vand.u32 2147483647, %v650
    %v663 = vand.u32 2147483647, %v651
    %v664 = vand.u32 2147483647, %v652
    %v665 = vand.u32 2147483647, %v653
    %v666 = vand.u32 2147483647, %v654
    %v667 = vand.u32 2147483647, %v655
    %v668 = vand.u32 2147483647, %v656
    %v669 = vand.u32 2147483647, %v657
    %v670 = vand.u32 2147483647, %v658
    %v671 = vand.u32 2147483647, %v659
    %v672 = vmul.f32 %v660, %v600
    %v673 = vmul.f32 %v661, %v601
    %v674 = vmul.f32 %v662, %v602
    %v675 = vmul.f32 %v663, %v603
    %v676 = vmul.f32 %v664, %v604
    %v677 = vmul.f32 %v665, %v605
    %v678 = vmul.f32 %v666, %v606
    %v679 = vmul.f32 %v667, %v607
    %v680 = vmul.f32 %v668, %v608
    %v681 = vmul.f32 %v669, %v609
    %v682 = vmul.f32 %v670, %v610
    %v683 = vmul.f32 %v671, %v611
    %vm684 = vcmask 244736
    %v685 = vsel %vm684, %v672, 0.0
    %v686 = vsel %vm684, %v673, 0.0
    %v687 = vadd.f32 %v685, %v686
    %v688 = vsel %vm684, %v674, 0.0
    %v689 = vadd.f32 %v687, %v688
    %v690 = vsel %vm684, %v675, 0.0
    %v691 = vadd.f32 %v689, %v690
    %v692 = vsel %vm684, %v676, 0.0
    %v693 = vadd.f32 %v691, %v692
    %v694 = vsel %vm684, %v677, 0.0
    %v695 = vadd.f32 %v693, %v694
    %v696 = vsel %vm684, %v678, 0.0
    %v697 = vadd.f32 %v695, %v696
    %v698 = vsel %vm684, %v679, 0.0
    %v699 = vadd.f32 %v697, %v698
    %v700 = vsel %vm684, %v680, 0.0
    %v701 = vadd.f32 %v699, %v700
    %v702 = vsel %vm684, %v681, 0.0
    %v703 = vadd.f32 %v701, %v702
    %v704 = vsel %vm684, %v682, 0.0
    %v705 = vadd.f32 %v703, %v704
    %v706 = vsel %vm684, %v683, 0.0
    %v707 = vadd.f32 %v705, %v706
    %708 = vadd.xlane.f32.xlu0 %v707
    %v709 = vpop.xlane.xlu0 %708
    %v710 = vrot.slane %v709, 4
    %v711 = vadd.f32 %v709, %v710
    %v712 = vrot.slane %v711, 2
    %v713 = vadd.f32 %v711, %v712
    %v714 = vrot.slane %v713, 1
    %v715 = vadd.f32 %v713, %v714
    %s716 = vtos %v715
    %s717 = sadd.f32 %s530, %s716
    %v718 = vsel %vm684, %v600, 0.0
    %v719 = vsel %vm684, %v601, 0.0
    %v720 = vadd.f32 %v718, %v719
    %v721 = vsel %vm684, %v602, 0.0
    %v722 = vadd.f32 %v720, %v721
    %v723 = vsel %vm684, %v603, 0.0
    %v724 = vadd.f32 %v722, %v723
    %v725 = vsel %vm684, %v604, 0.0
    %v726 = vadd.f32 %v724, %v725
    %v727 = vsel %vm684, %v605, 0.0
    %v728 = vadd.f32 %v726, %v727
    %v729 = vsel %vm684, %v606, 0.0
    %v730 = vadd.f32 %v728, %v729
    %v731 = vsel %vm684, %v607, 0.0
    %v732 = vadd.f32 %v730, %v731
    %v733 = vsel %vm684, %v608, 0.0
    %v734 = vadd.f32 %v732, %v733
    %v735 = vsel %vm684, %v609, 0.0
    %v736 = vadd.f32 %v734, %v735
    %v737 = vsel %vm684, %v610, 0.0
    %v738 = vadd.f32 %v736, %v737
    %v739 = vsel %vm684, %v611, 0.0
    %v740 = vadd.f32 %v738, %v739
    %741 = vadd.xlane.f32.xlu0 %v740
    %v742 = vpop.xlane.xlu0 %741
    %v743 = vrot.slane %v742, 4
    %v744 = vadd.f32 %v742, %v743
    %v745 = vrot.slane %v744, 2
    %v746 = vadd.f32 %v744, %v745
    %v747 = vrot.slane %v746, 1
    %v748 = vadd.f32 %v746, %v747
    %s749 = vtos %v748
    %s750 = sadd.f32 %s563, %s749
    %v751 = vand.u32 %v351, 1
    %v752 = vand.u32 %v352, 1
    %v753 = vand.u32 %v353, 1
    %v754 = vand.u32 %v354, 1
    %vm755 = vcmp.eq.s32.totalorder %v751, 0
    %vm756 = vcmp.eq.s32.totalorder %v752, 0
    %vm757 = vcmp.eq.s32.totalorder %v753, 0
    %vm758 = vcmp.eq.s32.totalorder %v754, 0
    %v759 = vand.u32 %v356, 1
    %vm760 = vcmp.eq.s32.totalorder %v759, 0
    %vm761 = vmand %vm755, %vm760
    %vm762 = vmand %vm756, %vm760
    %vm763 = vmand %vm757, %vm760
    %vm764 = vmand %vm758, %vm760
    %v765 = vsel %vm761, 1, 0
    %v766 = vsel %vm762, 1, 0
    %v767 = vsel %vm763, 1, 0
    %v768 = vsel %vm764, 1, 0
    %v769 = vcvt.s32.f32 %v765
    %v770 = vcvt.s32.f32 %v766
    %v771 = vcvt.s32.f32 %v767
    %v772 = vcvt.s32.f32 %v768
    %v773 = vmul.f32 %v110, %v769
    %v774 = vmul.f32 %v111, %v770
    %v775 = vmul.f32 %v112, %v771
    %v776 = vmul.f32 %v113, %v772
    %v777 = vmul.f32 %v114, %v769
    %v778 = vmul.f32 %v115, %v770
    %v779 = vmul.f32 %v116, %v771
    %v780 = vmul.f32 %v117, %v772
    %v781 = vmul.f32 %v118, %v769
    %v782 = vmul.f32 %v119, %v770
    %v783 = vmul.f32 %v120, %v771
    %v784 = vmul.f32 %v121, %v772
    %vm797 = vcmask 1043456
    %v798 = vrot.slane %v773, 4
    %v799 = vrot.slane %v774, 4
    %v800 = vsel %vm797, %v798, %v799
    %v801 = vrot.slane %v775, 4
    %v802 = vsel %vm797, %v799, %v801
    %v803 = vrot.slane %v776, 4
    %v804 = vsel %vm797, %v801, %v803
    %v805 = vrot.slane %v777, 4
    %v806 = vrot.slane %v778, 4
    %v807 = vsel %vm797, %v805, %v806
    %v808 = vrot.slane %v779, 4
    %v809 = vsel %vm797, %v806, %v808
    %v810 = vrot.slane %v780, 4
    %v811 = vsel %vm797, %v808, %v810
    %v812 = vrot.slane %v781, 4
    %v813 = vrot.slane %v782, 4
    %v814 = vsel %vm797, %v812, %v813
    %v815 = vrot.slane %v783, 4
    %v816 = vsel %vm797, %v813, %v815
    %v817 = vrot.slane %v784, 4
    %v818 = vsel %vm797, %v815, %v817
    %v831 = vmul.f32 %v773, %v800
    %v832 = vmul.f32 %v774, %v802
    %v833 = vmul.f32 %v775, %v804
    %v834 = vmul.f32 %v776, %v803
    %v835 = vmul.f32 %v777, %v807
    %v836 = vmul.f32 %v778, %v809
    %v837 = vmul.f32 %v779, %v811
    %v838 = vmul.f32 %v780, %v810
    %v839 = vmul.f32 %v781, %v814
    %v840 = vmul.f32 %v782, %v816
    %v841 = vmul.f32 %v783, %v818
    %v842 = vmul.f32 %v784, %v817
    %v843 = vrot.slane %v327, 4
    %v844 = vrot.slane %v329, 4
    %v845 = vsel %vm797, %v843, %v844
    %v846 = vrot.slane %v331, 4
    %v847 = vsel %vm797, %v844, %v846
    %v848 = vrot.slane %v333, 4
    %v849 = vsel %vm797, %v846, %v848
    %v850 = vrot.slane %v335, 4
    %v851 = vrot.slane %v337, 4
    %v852 = vsel %vm797, %v850, %v851
    %v853 = vrot.slane %v339, 4
    %v854 = vsel %vm797, %v851, %v853
    %v855 = vrot.slane %v341, 4
    %v856 = vsel %vm797, %v853, %v855
    %v857 = vrot.slane %v343, 4
    %v858 = vrot.slane %v345, 4
    %v859 = vsel %vm797, %v857, %v858
    %v860 = vrot.slane %v347, 4
    %v861 = vsel %vm797, %v858, %v860
    %v862 = vrot.slane %v349, 4
    %v863 = vsel %vm797, %v860, %v862
    %v876 = vsub.f32 %v327, %v845
    %v877 = vsub.f32 %v329, %v847
    %v878 = vsub.f32 %v331, %v849
    %v879 = vsub.f32 %v333, %v848
    %v880 = vsub.f32 %v335, %v852
    %v881 = vsub.f32 %v337, %v854
    %v882 = vsub.f32 %v339, %v856
    %v883 = vsub.f32 %v341, %v855
    %v884 = vsub.f32 %v343, %v859
    %v885 = vsub.f32 %v345, %v861
    %v886 = vsub.f32 %v347, %v863
    %v887 = vsub.f32 %v349, %v862
    %v888 = vand.u32 2147483647, %v876
    %v889 = vand.u32 2147483647, %v877
    %v890 = vand.u32 2147483647, %v878
    %v891 = vand.u32 2147483647, %v879
    %v892 = vand.u32 2147483647, %v880
    %v893 = vand.u32 2147483647, %v881
    %v894 = vand.u32 2147483647, %v882
    %v895 = vand.u32 2147483647, %v883
    %v896 = vand.u32 2147483647, %v884
    %v897 = vand.u32 2147483647, %v885
    %v898 = vand.u32 2147483647, %v886
    %v899 = vand.u32 2147483647, %v887
    %v900 = vmul.f32 %v888, %v831
    %v901 = vmul.f32 %v889, %v832
    %v902 = vmul.f32 %v890, %v833
    %v903 = vmul.f32 %v891, %v834
    %v904 = vmul.f32 %v892, %v835
    %v905 = vmul.f32 %v893, %v836
    %v906 = vmul.f32 %v894, %v837
    %v907 = vmul.f32 %v895, %v838
    %v908 = vmul.f32 %v896, %v839
    %v909 = vmul.f32 %v897, %v840
    %v910 = vmul.f32 %v898, %v841
    %v911 = vmul.f32 %v899, %v842
    %v912 = vsel %vm496, %v900, 0.0
    %v913 = vsel %vm496, %v901, 0.0
    %v914 = vadd.f32 %v912, %v913
    %v915 = vsel %vm496, %v902, 0.0
    %v916 = vadd.f32 %v914, %v915
    %vm917 = vcmask 257024
    %v918 = vsel %vm917, %v903, 0.0
    %v919 = vadd.f32 %v916, %v918
    %v920 = vsel %vm496, %v904, 0.0
    %v921 = vadd.f32 %v919, %v920
    %v922 = vsel %vm496, %v905, 0.0
    %v923 = vadd.f32 %v921, %v922
    %v924 = vsel %vm496, %v906, 0.0
    %v925 = vadd.f32 %v923, %v924
    %v926 = vsel %vm917, %v907, 0.0
    %v927 = vadd.f32 %v925, %v926
    %v928 = vsel %vm496, %v908, 0.0
    %v929 = vadd.f32 %v927, %v928
    %v930 = vsel %vm496, %v909, 0.0
    %v931 = vadd.f32 %v929, %v930
    %v932 = vsel %vm496, %v910, 0.0
    %v933 = vadd.f32 %v931, %v932
    %v934 = vsel %vm917, %v911, 0.0
    %v935 = vadd.f32 %v933, %v934
    %936 = vadd.xlane.f32.xlu0 %v935
    %v937 = vpop.xlane.xlu0 %936
    %v938 = vrot.slane %v937, 4
    %v939 = vadd.f32 %v937, %v938
    %v940 = vrot.slane %v939, 2
    %v941 = vadd.f32 %v939, %v940
    %v942 = vrot.slane %v941, 1
    %v943 = vadd.f32 %v941, %v942
    %s944 = vtos %v943
    %s945 = sadd.f32 %s944, 0.0
    %v946 = vsel %vm496, %v831, 0.0
    %v947 = vsel %vm496, %v832, 0.0
    %v948 = vadd.f32 %v946, %v947
    %v949 = vsel %vm496, %v833, 0.0
    %v950 = vadd.f32 %v948, %v949
    %v951 = vsel %vm917, %v834, 0.0
    %v952 = vadd.f32 %v950, %v951
    %v953 = vsel %vm496, %v835, 0.0
    %v954 = vadd.f32 %v952, %v953
    %v955 = vsel %vm496, %v836, 0.0
    %v956 = vadd.f32 %v954, %v955
    %v957 = vsel %vm496, %v837, 0.0
    %v958 = vadd.f32 %v956, %v957
    %v959 = vsel %vm917, %v838, 0.0
    %v960 = vadd.f32 %v958, %v959
    %v961 = vsel %vm496, %v839, 0.0
    %v962 = vadd.f32 %v960, %v961
    %v963 = vsel %vm496, %v840, 0.0
    %v964 = vadd.f32 %v962, %v963
    %v965 = vsel %vm496, %v841, 0.0
    %v966 = vadd.f32 %v964, %v965
    %v967 = vsel %vm917, %v842, 0.0
    %v968 = vadd.f32 %v966, %v967
    %969 = vadd.xlane.f32.xlu0 %v968
    %v970 = vpop.xlane.xlu0 %969
    %v971 = vrot.slane %v970, 4
    %v972 = vadd.f32 %v970, %v971
    %v973 = vrot.slane %v972, 2
    %v974 = vadd.f32 %v972, %v973
    %v975 = vrot.slane %v974, 1
    %v976 = vadd.f32 %v974, %v975
    %s977 = vtos %v976
    %s978 = sadd.f32 %s977, 0.0
    %979 = vrot.lane.b32.xlu0 %v773, 124
    %v980 = vpop.permute.xlu0 %979
    %981 = vrot.lane.b32.xlu0 %v774, 124
    %v982 = vpop.permute.xlu0 %981
    %983 = vrot.lane.b32.xlu0 %v775, 124
    %v984 = vpop.permute.xlu0 %983
    %985 = vrot.lane.b32.xlu0 %v776, 124
    %v986 = vpop.permute.xlu0 %985
    %987 = vrot.lane.b32.xlu0 %v777, 124
    %v988 = vpop.permute.xlu0 %987
    %989 = vrot.lane.b32.xlu0 %v778, 124
    %v990 = vpop.permute.xlu0 %989
    %991 = vrot.lane.b32.xlu0 %v779, 124
    %v992 = vpop.permute.xlu0 %991
    %993 = vrot.lane.b32.xlu0 %v780, 124
    %v994 = vpop.permute.xlu0 %993
    %995 = vrot.lane.b32.xlu0 %v781, 124
    %v996 = vpop.permute.xlu0 %995
    %997 = vrot.lane.b32.xlu0 %v782, 124
    %v998 = vpop.permute.xlu0 %997
    %999 = vrot.lane.b32.xlu0 %v783, 124
    %v1000 = vpop.permute.xlu0 %999
    %1001 = vrot.lane.b32.xlu0 %v784, 124
    %v1002 = vpop.permute.xlu0 %1001
    %v1015 = vmul.f32 %v773, %v980
    %v1016 = vmul.f32 %v774, %v982
    %v1017 = vmul.f32 %v775, %v984
    %v1018 = vmul.f32 %v776, %v986
    %v1019 = vmul.f32 %v777, %v988
    %v1020 = vmul.f32 %v778, %v990
    %v1021 = vmul.f32 %v779, %v992
    %v1022 = vmul.f32 %v780, %v994
    %v1023 = vmul.f32 %v781, %v996
    %v1024 = vmul.f32 %v782, %v998
    %v1025 = vmul.f32 %v783, %v1000
    %v1026 = vmul.f32 %v784, %v1002
    %1027 = vrot.lane.b32.xlu0 %v327, 124
    %v1028 = vpop.permute.xlu0 %1027
    %1029 = vrot.lane.b32.xlu0 %v329, 124
    %v1030 = vpop.permute.xlu0 %1029
    %1031 = vrot.lane.b32.xlu0 %v331, 124
    %v1032 = vpop.permute.xlu0 %1031
    %1033 = vrot.lane.b32.xlu0 %v333, 124
    %v1034 = vpop.permute.xlu0 %1033
    %1035 = vrot.lane.b32.xlu0 %v335, 124
    %v1036 = vpop.permute.xlu0 %1035
    %1037 = vrot.lane.b32.xlu0 %v337, 124
    %v1038 = vpop.permute.xlu0 %1037
    %1039 = vrot.lane.b32.xlu0 %v339, 124
    %v1040 = vpop.permute.xlu0 %1039
    %1041 = vrot.lane.b32.xlu0 %v341, 124
    %v1042 = vpop.permute.xlu0 %1041
    %1043 = vrot.lane.b32.xlu0 %v343, 124
    %v1044 = vpop.permute.xlu0 %1043
    %1045 = vrot.lane.b32.xlu0 %v345, 124
    %v1046 = vpop.permute.xlu0 %1045
    %1047 = vrot.lane.b32.xlu0 %v347, 124
    %v1048 = vpop.permute.xlu0 %1047
    %1049 = vrot.lane.b32.xlu0 %v349, 124
    %v1050 = vpop.permute.xlu0 %1049
    %v1063 = vsub.f32 %v327, %v1028
    %v1064 = vsub.f32 %v329, %v1030
    %v1065 = vsub.f32 %v331, %v1032
    %v1066 = vsub.f32 %v333, %v1034
    %v1067 = vsub.f32 %v335, %v1036
    %v1068 = vsub.f32 %v337, %v1038
    %v1069 = vsub.f32 %v339, %v1040
    %v1070 = vsub.f32 %v341, %v1042
    %v1071 = vsub.f32 %v343, %v1044
    %v1072 = vsub.f32 %v345, %v1046
    %v1073 = vsub.f32 %v347, %v1048
    %v1074 = vsub.f32 %v349, %v1050
    %v1075 = vand.u32 2147483647, %v1063
    %v1076 = vand.u32 2147483647, %v1064
    %v1077 = vand.u32 2147483647, %v1065
    %v1078 = vand.u32 2147483647, %v1066
    %v1079 = vand.u32 2147483647, %v1067
    %v1080 = vand.u32 2147483647, %v1068
    %v1081 = vand.u32 2147483647, %v1069
    %v1082 = vand.u32 2147483647, %v1070
    %v1083 = vand.u32 2147483647, %v1071
    %v1084 = vand.u32 2147483647, %v1072
    %v1085 = vand.u32 2147483647, %v1073
    %v1086 = vand.u32 2147483647, %v1074
    %v1087 = vmul.f32 %v1075, %v1015
    %v1088 = vmul.f32 %v1076, %v1016
    %v1089 = vmul.f32 %v1077, %v1017
    %v1090 = vmul.f32 %v1078, %v1018
    %v1091 = vmul.f32 %v1079, %v1019
    %v1092 = vmul.f32 %v1080, %v1020
    %v1093 = vmul.f32 %v1081, %v1021
    %v1094 = vmul.f32 %v1082, %v1022
    %v1095 = vmul.f32 %v1083, %v1023
    %v1096 = vmul.f32 %v1084, %v1024
    %v1097 = vmul.f32 %v1085, %v1025
    %v1098 = vmul.f32 %v1086, %v1026
    %vm1099 = vcmask 228352
    %v1100 = vsel %vm1099, %v1087, 0.0
    %v1101 = vsel %vm1099, %v1088, 0.0
    %v1102 = vadd.f32 %v1100, %v1101
    %v1103 = vsel %vm1099, %v1089, 0.0
    %v1104 = vadd.f32 %v1102, %v1103
    %v1105 = vsel %vm1099, %v1090, 0.0
    %v1106 = vadd.f32 %v1104, %v1105
    %v1107 = vsel %vm1099, %v1091, 0.0
    %v1108 = vadd.f32 %v1106, %v1107
    %v1109 = vsel %vm1099, %v1092, 0.0
    %v1110 = vadd.f32 %v1108, %v1109
    %v1111 = vsel %vm1099, %v1093, 0.0
    %v1112 = vadd.f32 %v1110, %v1111
    %v1113 = vsel %vm1099, %v1094, 0.0
    %v1114 = vadd.f32 %v1112, %v1113
    %v1115 = vsel %vm1099, %v1095, 0.0
    %v1116 = vadd.f32 %v1114, %v1115
    %v1117 = vsel %vm1099, %v1096, 0.0
    %v1118 = vadd.f32 %v1116, %v1117
    %v1119 = vsel %vm1099, %v1097, 0.0
    %v1120 = vadd.f32 %v1118, %v1119
    %v1121 = vsel %vm1099, %v1098, 0.0
    %v1122 = vadd.f32 %v1120, %v1121
    %1123 = vadd.xlane.f32.xlu0 %v1122
    %v1124 = vpop.xlane.xlu0 %1123
    %v1125 = vrot.slane %v1124, 4
    %v1126 = vadd.f32 %v1124, %v1125
    %v1127 = vrot.slane %v1126, 2
    %v1128 = vadd.f32 %v1126, %v1127
    %v1129 = vrot.slane %v1128, 1
    %v1130 = vadd.f32 %v1128, %v1129
    %s1131 = vtos %v1130
    %s1132 = sadd.f32 %s945, %s1131
    %v1133 = vsel %vm1099, %v1015, 0.0
    %v1134 = vsel %vm1099, %v1016, 0.0
    %v1135 = vadd.f32 %v1133, %v1134
    %v1136 = vsel %vm1099, %v1017, 0.0
    %v1137 = vadd.f32 %v1135, %v1136
    %v1138 = vsel %vm1099, %v1018, 0.0
    %v1139 = vadd.f32 %v1137, %v1138
    %v1140 = vsel %vm1099, %v1019, 0.0
    %v1141 = vadd.f32 %v1139, %v1140
    %v1142 = vsel %vm1099, %v1020, 0.0
    %v1143 = vadd.f32 %v1141, %v1142
    %v1144 = vsel %vm1099, %v1021, 0.0
    %v1145 = vadd.f32 %v1143, %v1144
    %v1146 = vsel %vm1099, %v1022, 0.0
    %v1147 = vadd.f32 %v1145, %v1146
    %v1148 = vsel %vm1099, %v1023, 0.0
    %v1149 = vadd.f32 %v1147, %v1148
    %v1150 = vsel %vm1099, %v1024, 0.0
    %v1151 = vadd.f32 %v1149, %v1150
    %v1152 = vsel %vm1099, %v1025, 0.0
    %v1153 = vadd.f32 %v1151, %v1152
    %v1154 = vsel %vm1099, %v1026, 0.0
    %v1155 = vadd.f32 %v1153, %v1154
    %1156 = vadd.xlane.f32.xlu0 %v1155
    %v1157 = vpop.xlane.xlu0 %1156
    %v1158 = vrot.slane %v1157, 4
    %v1159 = vadd.f32 %v1157, %v1158
    %v1160 = vrot.slane %v1159, 2
    %v1161 = vadd.f32 %v1159, %v1160
    %v1162 = vrot.slane %v1161, 1
    %v1163 = vadd.f32 %v1161, %v1162
    %s1164 = vtos %v1163
    %s1165 = sadd.f32 %s978, %s1164
    %v1166 = vand.u32 %v351, 3
    %v1167 = vand.u32 %v352, 3
    %v1168 = vand.u32 %v353, 3
    %v1169 = vand.u32 %v354, 3
    %vm1170 = vcmp.eq.s32.totalorder %v1166, 0
    %vm1171 = vcmp.eq.s32.totalorder %v1167, 0
    %vm1172 = vcmp.eq.s32.totalorder %v1168, 0
    %vm1173 = vcmp.eq.s32.totalorder %v1169, 0
    %v1174 = vand.u32 %v356, 3
    %vm1175 = vcmp.eq.s32.totalorder %v1174, 0
    %vm1176 = vmand %vm1170, %vm1175
    %vm1177 = vmand %vm1171, %vm1175
    %vm1178 = vmand %vm1172, %vm1175
    %vm1179 = vmand %vm1173, %vm1175
    %v1180 = vsel %vm1176, 1, 0
    %v1181 = vsel %vm1177, 1, 0
    %v1182 = vsel %vm1178, 1, 0
    %v1183 = vsel %vm1179, 1, 0
    %v1184 = vcvt.s32.f32 %v1180
    %v1185 = vcvt.s32.f32 %v1181
    %v1186 = vcvt.s32.f32 %v1182
    %v1187 = vcvt.s32.f32 %v1183
    %v1188 = vmul.f32 %v110, %v1184
    %v1189 = vmul.f32 %v111, %v1185
    %v1190 = vmul.f32 %v112, %v1186
    %v1191 = vmul.f32 %v113, %v1187
    %v1192 = vmul.f32 %v114, %v1184
    %v1193 = vmul.f32 %v115, %v1185
    %v1194 = vmul.f32 %v116, %v1186
    %v1195 = vmul.f32 %v117, %v1187
    %v1196 = vmul.f32 %v118, %v1184
    %v1197 = vmul.f32 %v119, %v1185
    %v1198 = vmul.f32 %v120, %v1186
    %v1199 = vmul.f32 %v121, %v1187
    %v1200 = vmul.f32 %v1188, %v1189
    %v1201 = vmul.f32 %v1189, %v1190
    %v1202 = vmul.f32 %v1190, %v1191
    %v1203 = vmul.f32 %v1192, %v1193
    %v1204 = vmul.f32 %v1193, %v1194
    %v1205 = vmul.f32 %v1194, %v1195
    %v1206 = vmul.f32 %v1196, %v1197
    %v1207 = vmul.f32 %v1197, %v1198
    %v1208 = vmul.f32 %v1198, %v1199
    %v1209 = vsub.f32 %v327, %v329
    %v1210 = vsub.f32 %v329, %v331
    %v1211 = vsub.f32 %v331, %v333
    %v1212 = vsub.f32 %v335, %v337
    %v1213 = vsub.f32 %v337, %v339
    %v1214 = vsub.f32 %v339, %v341
    %v1215 = vsub.f32 %v343, %v345
    %v1216 = vsub.f32 %v345, %v347
    %v1217 = vsub.f32 %v347, %v349
    %v1218 = vand.u32 2147483647, %v1209
    %v1219 = vand.u32 2147483647, %v1210
    %v1220 = vand.u32 2147483647, %v1211
    %v1221 = vand.u32 2147483647, %v1212
    %v1222 = vand.u32 2147483647, %v1213
    %v1223 = vand.u32 2147483647, %v1214
    %v1224 = vand.u32 2147483647, %v1215
    %v1225 = vand.u32 2147483647, %v1216
    %v1226 = vand.u32 2147483647, %v1217
    %v1227 = vmul.f32 %v1218, %v1200
    %v1228 = vmul.f32 %v1219, %v1201
    %v1229 = vmul.f32 %v1220, %v1202
    %v1230 = vmul.f32 %v1221, %v1203
    %v1231 = vmul.f32 %v1222, %v1204
    %v1232 = vmul.f32 %v1223, %v1205
    %v1233 = vmul.f32 %v1224, %v1206
    %v1234 = vmul.f32 %v1225, %v1207
    %v1235 = vmul.f32 %v1226, %v1208
    %v1236 = vsel %vm496, %v1227, 0.0
    %v1237 = vsel %vm496, %v1228, 0.0
    %v1238 = vadd.f32 %v1236, %v1237
    %v1239 = vsel %vm496, %v1229, 0.0
    %v1240 = vadd.f32 %v1238, %v1239
    %v1241 = vsel %vm496, %v1230, 0.0
    %v1242 = vadd.f32 %v1240, %v1241
    %v1243 = vsel %vm496, %v1231, 0.0
    %v1244 = vadd.f32 %v1242, %v1243
    %v1245 = vsel %vm496, %v1232, 0.0
    %v1246 = vadd.f32 %v1244, %v1245
    %v1247 = vsel %vm496, %v1233, 0.0
    %v1248 = vadd.f32 %v1246, %v1247
    %v1249 = vsel %vm496, %v1234, 0.0
    %v1250 = vadd.f32 %v1248, %v1249
    %v1251 = vsel %vm496, %v1235, 0.0
    %v1252 = vadd.f32 %v1250, %v1251
    %1253 = vadd.xlane.f32.xlu0 %v1252
    %v1254 = vpop.xlane.xlu0 %1253
    %v1255 = vrot.slane %v1254, 4
    %v1256 = vadd.f32 %v1254, %v1255
    %v1257 = vrot.slane %v1256, 2
    %v1258 = vadd.f32 %v1256, %v1257
    %v1259 = vrot.slane %v1258, 1
    %v1260 = vadd.f32 %v1258, %v1259
    %s1261 = vtos %v1260
    %s1262 = sadd.f32 %s1261, 0.0
    %v1263 = vsel %vm496, %v1200, 0.0
    %v1264 = vsel %vm496, %v1201, 0.0
    %v1265 = vadd.f32 %v1263, %v1264
    %v1266 = vsel %vm496, %v1202, 0.0
    %v1267 = vadd.f32 %v1265, %v1266
    %v1268 = vsel %vm496, %v1203, 0.0
    %v1269 = vadd.f32 %v1267, %v1268
    %v1270 = vsel %vm496, %v1204, 0.0
    %v1271 = vadd.f32 %v1269, %v1270
    %v1272 = vsel %vm496, %v1205, 0.0
    %v1273 = vadd.f32 %v1271, %v1272
    %v1274 = vsel %vm496, %v1206, 0.0
    %v1275 = vadd.f32 %v1273, %v1274
    %v1276 = vsel %vm496, %v1207, 0.0
    %v1277 = vadd.f32 %v1275, %v1276
    %v1278 = vsel %vm496, %v1208, 0.0
    %v1279 = vadd.f32 %v1277, %v1278
    %1280 = vadd.xlane.f32.xlu0 %v1279
    %v1281 = vpop.xlane.xlu0 %1280
    %v1282 = vrot.slane %v1281, 4
    %v1283 = vadd.f32 %v1281, %v1282
    %v1284 = vrot.slane %v1283, 2
    %v1285 = vadd.f32 %v1283, %v1284
    %v1286 = vrot.slane %v1285, 1
    %v1287 = vadd.f32 %v1285, %v1286
    %s1288 = vtos %v1287
    %s1289 = sadd.f32 %s1288, 0.0
    %1302 = vrot.lane.b32.xlu0 %v1188, 120
    %v1303 = vpop.permute.xlu0 %1302
    %1304 = vrot.lane.b32.xlu0 %v1189, 120
    %v1305 = vpop.permute.xlu0 %1304
    %1306 = vrot.lane.b32.xlu0 %v1190, 120
    %v1307 = vpop.permute.xlu0 %1306
    %1308 = vrot.lane.b32.xlu0 %v1191, 120
    %v1309 = vpop.permute.xlu0 %1308
    %1310 = vrot.lane.b32.xlu0 %v1192, 120
    %v1311 = vpop.permute.xlu0 %1310
    %1312 = vrot.lane.b32.xlu0 %v1193, 120
    %v1313 = vpop.permute.xlu0 %1312
    %1314 = vrot.lane.b32.xlu0 %v1194, 120
    %v1315 = vpop.permute.xlu0 %1314
    %1316 = vrot.lane.b32.xlu0 %v1195, 120
    %v1317 = vpop.permute.xlu0 %1316
    %1318 = vrot.lane.b32.xlu0 %v1196, 120
    %v1319 = vpop.permute.xlu0 %1318
    %1320 = vrot.lane.b32.xlu0 %v1197, 120
    %v1321 = vpop.permute.xlu0 %1320
    %1322 = vrot.lane.b32.xlu0 %v1198, 120
    %v1323 = vpop.permute.xlu0 %1322
    %1324 = vrot.lane.b32.xlu0 %v1199, 120
    %v1325 = vpop.permute.xlu0 %1324
    %v1338 = vmul.f32 %v1188, %v1303
    %v1339 = vmul.f32 %v1189, %v1305
    %v1340 = vmul.f32 %v1190, %v1307
    %v1341 = vmul.f32 %v1191, %v1309
    %v1342 = vmul.f32 %v1192, %v1311
    %v1343 = vmul.f32 %v1193, %v1313
    %v1344 = vmul.f32 %v1194, %v1315
    %v1345 = vmul.f32 %v1195, %v1317
    %v1346 = vmul.f32 %v1196, %v1319
    %v1347 = vmul.f32 %v1197, %v1321
    %v1348 = vmul.f32 %v1198, %v1323
    %v1349 = vmul.f32 %v1199, %v1325
    %1350 = vrot.lane.b32.xlu0 %v327, 120
    %v1351 = vpop.permute.xlu0 %1350
    %1352 = vrot.lane.b32.xlu0 %v329, 120
    %v1353 = vpop.permute.xlu0 %1352
    %1354 = vrot.lane.b32.xlu0 %v331, 120
    %v1355 = vpop.permute.xlu0 %1354
    %1356 = vrot.lane.b32.xlu0 %v333, 120
    %v1357 = vpop.permute.xlu0 %1356
    %1358 = vrot.lane.b32.xlu0 %v335, 120
    %v1359 = vpop.permute.xlu0 %1358
    %1360 = vrot.lane.b32.xlu0 %v337, 120
    %v1361 = vpop.permute.xlu0 %1360
    %1362 = vrot.lane.b32.xlu0 %v339, 120
    %v1363 = vpop.permute.xlu0 %1362
    %1364 = vrot.lane.b32.xlu0 %v341, 120
    %v1365 = vpop.permute.xlu0 %1364
    %1366 = vrot.lane.b32.xlu0 %v343, 120
    %v1367 = vpop.permute.xlu0 %1366
    %1368 = vrot.lane.b32.xlu0 %v345, 120
    %v1369 = vpop.permute.xlu0 %1368
    %1370 = vrot.lane.b32.xlu0 %v347, 120
    %v1371 = vpop.permute.xlu0 %1370
    %1372 = vrot.lane.b32.xlu0 %v349, 120
    %v1373 = vpop.permute.xlu0 %1372
    %v1386 = vsub.f32 %v327, %v1351
    %v1387 = vsub.f32 %v329, %v1353
    %v1388 = vsub.f32 %v331, %v1355
    %v1389 = vsub.f32 %v333, %v1357
    %v1390 = vsub.f32 %v335, %v1359
    %v1391 = vsub.f32 %v337, %v1361
    %v1392 = vsub.f32 %v339, %v1363
    %v1393 = vsub.f32 %v341, %v1365
    %v1394 = vsub.f32 %v343, %v1367
    %v1395 = vsub.f32 %v345, %v1369
    %v1396 = vsub.f32 %v347, %v1371
    %v1397 = vsub.f32 %v349, %v1373
    %v1398 = vand.u32 2147483647, %v1386
    %v1399 = vand.u32 2147483647, %v1387
    %v1400 = vand.u32 2147483647, %v1388
    %v1401 = vand.u32 2147483647, %v1389
    %v1402 = vand.u32 2147483647, %v1390
    %v1403 = vand.u32 2147483647, %v1391
    %v1404 = vand.u32 2147483647, %v1392
    %v1405 = vand.u32 2147483647, %v1393
    %v1406 = vand.u32 2147483647, %v1394
    %v1407 = vand.u32 2147483647, %v1395
    %v1408 = vand.u32 2147483647, %v1396
    %v1409 = vand.u32 2147483647, %v1397
    %v1410 = vmul.f32 %v1398, %v1338
    %v1411 = vmul.f32 %v1399, %v1339
    %v1412 = vmul.f32 %v1400, %v1340
    %v1413 = vmul.f32 %v1401, %v1341
    %v1414 = vmul.f32 %v1402, %v1342
    %v1415 = vmul.f32 %v1403, %v1343
    %v1416 = vmul.f32 %v1404, %v1344
    %v1417 = vmul.f32 %v1405, %v1345
    %v1418 = vmul.f32 %v1406, %v1346
    %v1419 = vmul.f32 %v1407, %v1347
    %v1420 = vmul.f32 %v1408, %v1348
    %v1421 = vmul.f32 %v1409, %v1349
    %vm1422 = vcmask 195584
    %v1423 = vsel %vm1422, %v1410, 0.0
    %v1424 = vsel %vm1422, %v1411, 0.0
    %v1425 = vadd.f32 %v1423, %v1424
    %v1426 = vsel %vm1422, %v1412, 0.0
    %v1427 = vadd.f32 %v1425, %v1426
    %v1428 = vsel %vm1422, %v1413, 0.0
    %v1429 = vadd.f32 %v1427, %v1428
    %v1430 = vsel %vm1422, %v1414, 0.0
    %v1431 = vadd.f32 %v1429, %v1430
    %v1432 = vsel %vm1422, %v1415, 0.0
    %v1433 = vadd.f32 %v1431, %v1432
    %v1434 = vsel %vm1422, %v1416, 0.0
    %v1435 = vadd.f32 %v1433, %v1434
    %v1436 = vsel %vm1422, %v1417, 0.0
    %v1437 = vadd.f32 %v1435, %v1436
    %v1438 = vsel %vm1422, %v1418, 0.0
    %v1439 = vadd.f32 %v1437, %v1438
    %v1440 = vsel %vm1422, %v1419, 0.0
    %v1441 = vadd.f32 %v1439, %v1440
    %v1442 = vsel %vm1422, %v1420, 0.0
    %v1443 = vadd.f32 %v1441, %v1442
    %v1444 = vsel %vm1422, %v1421, 0.0
    %v1445 = vadd.f32 %v1443, %v1444
    %1446 = vadd.xlane.f32.xlu0 %v1445
    %v1447 = vpop.xlane.xlu0 %1446
    %v1448 = vrot.slane %v1447, 4
    %v1449 = vadd.f32 %v1447, %v1448
    %v1450 = vrot.slane %v1449, 2
    %v1451 = vadd.f32 %v1449, %v1450
    %v1452 = vrot.slane %v1451, 1
    %v1453 = vadd.f32 %v1451, %v1452
    %s1454 = vtos %v1453
    %s1455 = sadd.f32 %s1262, %s1454
    %v1456 = vsel %vm1422, %v1338, 0.0
    %v1457 = vsel %vm1422, %v1339, 0.0
    %v1458 = vadd.f32 %v1456, %v1457
    %v1459 = vsel %vm1422, %v1340, 0.0
    %v1460 = vadd.f32 %v1458, %v1459
    %v1461 = vsel %vm1422, %v1341, 0.0
    %v1462 = vadd.f32 %v1460, %v1461
    %v1463 = vsel %vm1422, %v1342, 0.0
    %v1464 = vadd.f32 %v1462, %v1463
    %v1465 = vsel %vm1422, %v1343, 0.0
    %v1466 = vadd.f32 %v1464, %v1465
    %v1467 = vsel %vm1422, %v1344, 0.0
    %v1468 = vadd.f32 %v1466, %v1467
    %v1469 = vsel %vm1422, %v1345, 0.0
    %v1470 = vadd.f32 %v1468, %v1469
    %v1471 = vsel %vm1422, %v1346, 0.0
    %v1472 = vadd.f32 %v1470, %v1471
    %v1473 = vsel %vm1422, %v1347, 0.0
    %v1474 = vadd.f32 %v1472, %v1473
    %v1475 = vsel %vm1422, %v1348, 0.0
    %v1476 = vadd.f32 %v1474, %v1475
    %v1477 = vsel %vm1422, %v1349, 0.0
    %v1478 = vadd.f32 %v1476, %v1477
    %1479 = vadd.xlane.f32.xlu0 %v1478
    %v1480 = vpop.xlane.xlu0 %1479
    %v1481 = vrot.slane %v1480, 4
    %v1482 = vadd.f32 %v1480, %v1481
    %v1483 = vrot.slane %v1482, 2
    %v1484 = vadd.f32 %v1482, %v1483
    %v1485 = vrot.slane %v1484, 1
    %v1486 = vadd.f32 %v1484, %v1485
    %s1487 = vtos %v1486
    %s1488 = sadd.f32 %s1289, %s1487
    %v1489 = vand.u32 %v351, 7
    %v1490 = vand.u32 %v352, 7
    %v1491 = vand.u32 %v353, 7
    %v1492 = vand.u32 %v354, 7
    %vm1493 = vcmp.eq.s32.totalorder %v1489, 0
    %vm1494 = vcmp.eq.s32.totalorder %v1490, 0
    %vm1495 = vcmp.eq.s32.totalorder %v1491, 0
    %vm1496 = vcmp.eq.s32.totalorder %v1492, 0
    %v1497 = vand.u32 %v356, 7
    %vm1498 = vcmp.eq.s32.totalorder %v1497, 0
    %vm1499 = vmand %vm1493, %vm1498
    %vm1500 = vmand %vm1494, %vm1498
    %vm1501 = vmand %vm1495, %vm1498
    %vm1502 = vmand %vm1496, %vm1498
    %v1503 = vsel %vm1499, 1, 0
    %v1504 = vsel %vm1500, 1, 0
    %v1505 = vsel %vm1501, 1, 0
    %v1506 = vsel %vm1502, 1, 0
    %v1507 = vcvt.s32.f32 %v1503
    %v1508 = vcvt.s32.f32 %v1504
    %v1509 = vcvt.s32.f32 %v1505
    %v1510 = vcvt.s32.f32 %v1506
    %v1511 = vmul.f32 %v110, %v1507
    %v1512 = vmul.f32 %v111, %v1508
    %v1513 = vmul.f32 %v112, %v1509
    %v1514 = vmul.f32 %v113, %v1510
    %v1515 = vmul.f32 %v114, %v1507
    %v1516 = vmul.f32 %v115, %v1508
    %v1517 = vmul.f32 %v116, %v1509
    %v1518 = vmul.f32 %v117, %v1510
    %v1519 = vmul.f32 %v118, %v1507
    %v1520 = vmul.f32 %v119, %v1508
    %v1521 = vmul.f32 %v120, %v1509
    %v1522 = vmul.f32 %v121, %v1510
    %v1523 = vmul.f32 %v1511, %v1513
    %v1524 = vmul.f32 %v1512, %v1514
    %v1525 = vmul.f32 %v1515, %v1517
    %v1526 = vmul.f32 %v1516, %v1518
    %v1527 = vmul.f32 %v1519, %v1521
    %v1528 = vmul.f32 %v1520, %v1522
    %v1529 = vsub.f32 %v327, %v331
    %v1530 = vsub.f32 %v329, %v333
    %v1531 = vsub.f32 %v335, %v339
    %v1532 = vsub.f32 %v337, %v341
    %v1533 = vsub.f32 %v343, %v347
    %v1534 = vsub.f32 %v345, %v349
    %v1535 = vand.u32 2147483647, %v1529
    %v1536 = vand.u32 2147483647, %v1530
    %v1537 = vand.u32 2147483647, %v1531
    %v1538 = vand.u32 2147483647, %v1532
    %v1539 = vand.u32 2147483647, %v1533
    %v1540 = vand.u32 2147483647, %v1534
    %v1541 = vmul.f32 %v1535, %v1523
    %v1542 = vmul.f32 %v1536, %v1524
    %v1543 = vmul.f32 %v1537, %v1525
    %v1544 = vmul.f32 %v1538, %v1526
    %v1545 = vmul.f32 %v1539, %v1527
    %v1546 = vmul.f32 %v1540, %v1528
    %v1547 = vsel %vm496, %v1541, 0.0
    %v1548 = vsel %vm496, %v1542, 0.0
    %v1549 = vadd.f32 %v1547, %v1548
    %v1550 = vsel %vm496, %v1543, 0.0
    %v1551 = vadd.f32 %v1549, %v1550
    %v1552 = vsel %vm496, %v1544, 0.0
    %v1553 = vadd.f32 %v1551, %v1552
    %v1554 = vsel %vm496, %v1545, 0.0
    %v1555 = vadd.f32 %v1553, %v1554
    %v1556 = vsel %vm496, %v1546, 0.0
    %v1557 = vadd.f32 %v1555, %v1556
    %1558 = vadd.xlane.f32.xlu0 %v1557
    %v1559 = vpop.xlane.xlu0 %1558
    %v1560 = vrot.slane %v1559, 4
    %v1561 = vadd.f32 %v1559, %v1560
    %v1562 = vrot.slane %v1561, 2
    %v1563 = vadd.f32 %v1561, %v1562
    %v1564 = vrot.slane %v1563, 1
    %v1565 = vadd.f32 %v1563, %v1564
    %s1566 = vtos %v1565
    %s1567 = sadd.f32 %s1566, 0.0
    %v1568 = vsel %vm496, %v1523, 0.0
    %v1569 = vsel %vm496, %v1524, 0.0
    %v1570 = vadd.f32 %v1568, %v1569
    %v1571 = vsel %vm496, %v1525, 0.0
    %v1572 = vadd.f32 %v1570, %v1571
    %v1573 = vsel %vm496, %v1526, 0.0
    %v1574 = vadd.f32 %v1572, %v1573
    %v1575 = vsel %vm496, %v1527, 0.0
    %v1576 = vadd.f32 %v1574, %v1575
    %v1577 = vsel %vm496, %v1528, 0.0
    %v1578 = vadd.f32 %v1576, %v1577
    %1579 = vadd.xlane.f32.xlu0 %v1578
    %v1580 = vpop.xlane.xlu0 %1579
    %v1581 = vrot.slane %v1580, 4
    %v1582 = vadd.f32 %v1580, %v1581
    %v1583 = vrot.slane %v1582, 2
    %v1584 = vadd.f32 %v1582, %v1583
    %v1585 = vrot.slane %v1584, 1
    %v1586 = vadd.f32 %v1584, %v1585
    %s1587 = vtos %v1586
    %s1588 = sadd.f32 %s1587, 0.0
    %1601 = vrot.lane.b32.xlu0 %v1511, 112
    %v1602 = vpop.permute.xlu0 %1601
    %1603 = vrot.lane.b32.xlu0 %v1512, 112
    %v1604 = vpop.permute.xlu0 %1603
    %1605 = vrot.lane.b32.xlu0 %v1513, 112
    %v1606 = vpop.permute.xlu0 %1605
    %1607 = vrot.lane.b32.xlu0 %v1514, 112
    %v1608 = vpop.permute.xlu0 %1607
    %1609 = vrot.lane.b32.xlu0 %v1515, 112
    %v1610 = vpop.permute.xlu0 %1609
    %1611 = vrot.lane.b32.xlu0 %v1516, 112
    %v1612 = vpop.permute.xlu0 %1611
    %1613 = vrot.lane.b32.xlu0 %v1517, 112
    %v1614 = vpop.permute.xlu0 %1613
    %1615 = vrot.lane.b32.xlu0 %v1518, 112
    %v1616 = vpop.permute.xlu0 %1615
    %1617 = vrot.lane.b32.xlu0 %v1519, 112
    %v1618 = vpop.permute.xlu0 %1617
    %1619 = vrot.lane.b32.xlu0 %v1520, 112
    %v1620 = vpop.permute.xlu0 %1619
    %1621 = vrot.lane.b32.xlu0 %v1521, 112
    %v1622 = vpop.permute.xlu0 %1621
    %1623 = vrot.lane.b32.xlu0 %v1522, 112
    %v1624 = vpop.permute.xlu0 %1623
    %v1637 = vmul.f32 %v1511, %v1602
    %v1638 = vmul.f32 %v1512, %v1604
    %v1639 = vmul.f32 %v1513, %v1606
    %v1640 = vmul.f32 %v1514, %v1608
    %v1641 = vmul.f32 %v1515, %v1610
    %v1642 = vmul.f32 %v1516, %v1612
    %v1643 = vmul.f32 %v1517, %v1614
    %v1644 = vmul.f32 %v1518, %v1616
    %v1645 = vmul.f32 %v1519, %v1618
    %v1646 = vmul.f32 %v1520, %v1620
    %v1647 = vmul.f32 %v1521, %v1622
    %v1648 = vmul.f32 %v1522, %v1624
    %1649 = vrot.lane.b32.xlu0 %v327, 112
    %v1650 = vpop.permute.xlu0 %1649
    %1651 = vrot.lane.b32.xlu0 %v329, 112
    %v1652 = vpop.permute.xlu0 %1651
    %1653 = vrot.lane.b32.xlu0 %v331, 112
    %v1654 = vpop.permute.xlu0 %1653
    %1655 = vrot.lane.b32.xlu0 %v333, 112
    %v1656 = vpop.permute.xlu0 %1655
    %1657 = vrot.lane.b32.xlu0 %v335, 112
    %v1658 = vpop.permute.xlu0 %1657
    %1659 = vrot.lane.b32.xlu0 %v337, 112
    %v1660 = vpop.permute.xlu0 %1659
    %1661 = vrot.lane.b32.xlu0 %v339, 112
    %v1662 = vpop.permute.xlu0 %1661
    %1663 = vrot.lane.b32.xlu0 %v341, 112
    %v1664 = vpop.permute.xlu0 %1663
    %1665 = vrot.lane.b32.xlu0 %v343, 112
    %v1666 = vpop.permute.xlu0 %1665
    %1667 = vrot.lane.b32.xlu0 %v345, 112
    %v1668 = vpop.permute.xlu0 %1667
    %1669 = vrot.lane.b32.xlu0 %v347, 112
    %v1670 = vpop.permute.xlu0 %1669
    %1671 = vrot.lane.b32.xlu0 %v349, 112
    %v1672 = vpop.permute.xlu0 %1671
    %v1685 = vsub.f32 %v327, %v1650
    %v1686 = vsub.f32 %v329, %v1652
    %v1687 = vsub.f32 %v331, %v1654
    %v1688 = vsub.f32 %v333, %v1656
    %v1689 = vsub.f32 %v335, %v1658
    %v1690 = vsub.f32 %v337, %v1660
    %v1691 = vsub.f32 %v339, %v1662
    %v1692 = vsub.f32 %v341, %v1664
    %v1693 = vsub.f32 %v343, %v1666
    %v1694 = vsub.f32 %v345, %v1668
    %v1695 = vsub.f32 %v347, %v1670
    %v1696 = vsub.f32 %v349, %v1672
    %v1697 = vand.u32 2147483647, %v1685
    %v1698 = vand.u32 2147483647, %v1686
    %v1699 = vand.u32 2147483647, %v1687
    %v1700 = vand.u32 2147483647, %v1688
    %v1701 = vand.u32 2147483647, %v1689
    %v1702 = vand.u32 2147483647, %v1690
    %v1703 = vand.u32 2147483647, %v1691
    %v1704 = vand.u32 2147483647, %v1692
    %v1705 = vand.u32 2147483647, %v1693
    %v1706 = vand.u32 2147483647, %v1694
    %v1707 = vand.u32 2147483647, %v1695
    %v1708 = vand.u32 2147483647, %v1696
    %v1709 = vmul.f32 %v1697, %v1637
    %v1710 = vmul.f32 %v1698, %v1638
    %v1711 = vmul.f32 %v1699, %v1639
    %v1712 = vmul.f32 %v1700, %v1640
    %v1713 = vmul.f32 %v1701, %v1641
    %v1714 = vmul.f32 %v1702, %v1642
    %v1715 = vmul.f32 %v1703, %v1643
    %v1716 = vmul.f32 %v1704, %v1644
    %v1717 = vmul.f32 %v1705, %v1645
    %v1718 = vmul.f32 %v1706, %v1646
    %v1719 = vmul.f32 %v1707, %v1647
    %v1720 = vmul.f32 %v1708, %v1648
    %vm1721 = vcmask 130048
    %v1722 = vsel %vm1721, %v1709, 0.0
    %v1723 = vsel %vm1721, %v1710, 0.0
    %v1724 = vadd.f32 %v1722, %v1723
    %v1725 = vsel %vm1721, %v1711, 0.0
    %v1726 = vadd.f32 %v1724, %v1725
    %v1727 = vsel %vm1721, %v1712, 0.0
    %v1728 = vadd.f32 %v1726, %v1727
    %v1729 = vsel %vm1721, %v1713, 0.0
    %v1730 = vadd.f32 %v1728, %v1729
    %v1731 = vsel %vm1721, %v1714, 0.0
    %v1732 = vadd.f32 %v1730, %v1731
    %v1733 = vsel %vm1721, %v1715, 0.0
    %v1734 = vadd.f32 %v1732, %v1733
    %v1735 = vsel %vm1721, %v1716, 0.0
    %v1736 = vadd.f32 %v1734, %v1735
    %v1737 = vsel %vm1721, %v1717, 0.0
    %v1738 = vadd.f32 %v1736, %v1737
    %v1739 = vsel %vm1721, %v1718, 0.0
    %v1740 = vadd.f32 %v1738, %v1739
    %v1741 = vsel %vm1721, %v1719, 0.0
    %v1742 = vadd.f32 %v1740, %v1741
    %v1743 = vsel %vm1721, %v1720, 0.0
    %v1744 = vadd.f32 %v1742, %v1743
    %1745 = vadd.xlane.f32.xlu0 %v1744
    %v1746 = vpop.xlane.xlu0 %1745
    %v1747 = vrot.slane %v1746, 4
    %v1748 = vadd.f32 %v1746, %v1747
    %v1749 = vrot.slane %v1748, 2
    %v1750 = vadd.f32 %v1748, %v1749
    %v1751 = vrot.slane %v1750, 1
    %v1752 = vadd.f32 %v1750, %v1751
    %s1753 = vtos %v1752
    %s1754 = sadd.f32 %s1567, %s1753
    %v1755 = vsel %vm1721, %v1637, 0.0
    %v1756 = vsel %vm1721, %v1638, 0.0
    %v1757 = vadd.f32 %v1755, %v1756
    %v1758 = vsel %vm1721, %v1639, 0.0
    %v1759 = vadd.f32 %v1757, %v1758
    %v1760 = vsel %vm1721, %v1640, 0.0
    %v1761 = vadd.f32 %v1759, %v1760
    %v1762 = vsel %vm1721, %v1641, 0.0
    %v1763 = vadd.f32 %v1761, %v1762
    %v1764 = vsel %vm1721, %v1642, 0.0
    %v1765 = vadd.f32 %v1763, %v1764
    %v1766 = vsel %vm1721, %v1643, 0.0
    %v1767 = vadd.f32 %v1765, %v1766
    %v1768 = vsel %vm1721, %v1644, 0.0
    %v1769 = vadd.f32 %v1767, %v1768
    %v1770 = vsel %vm1721, %v1645, 0.0
    %v1771 = vadd.f32 %v1769, %v1770
    %v1772 = vsel %vm1721, %v1646, 0.0
    %v1773 = vadd.f32 %v1771, %v1772
    %v1774 = vsel %vm1721, %v1647, 0.0
    %v1775 = vadd.f32 %v1773, %v1774
    %v1776 = vsel %vm1721, %v1648, 0.0
    %v1777 = vadd.f32 %v1775, %v1776
    %1778 = vadd.xlane.f32.xlu0 %v1777
    %v1779 = vpop.xlane.xlu0 %1778
    %v1780 = vrot.slane %v1779, 4
    %v1781 = vadd.f32 %v1779, %v1780
    %v1782 = vrot.slane %v1781, 2
    %v1783 = vadd.f32 %v1781, %v1782
    %v1784 = vrot.slane %v1783, 1
    %v1785 = vadd.f32 %v1783, %v1784
    %s1786 = vtos %v1785
    %s1787 = sadd.f32 %s1588, %s1786
    %vm1788 = vcmp.eq.s32.totalorder %v351, 0
    %vm1789 = vcmp.eq.s32.totalorder %v356, 0
    %vm1790 = vmand %vm1788, %vm1789
    %v1791 = vsel %vm1790, 1, 0
    %v1792 = vcvt.s32.f32 %v1791
    %v1793 = vstv %s717
    %v1794 = vmul.f32 %v1793, %v1792
    %v1795 = vadd.f32 %v1794, 0.0
    %vm1796 = vcmp.eq.s32.totalorder %v356, 1
    %vm1797 = vmand %vm1788, %vm1796
    %v1798 = vsel %vm1797, 1, 0
    %v1799 = vcvt.s32.f32 %v1798
    %v1800 = vstv %s750
    %v1801 = vmul.f32 %v1800, %v1799
    %v1802 = vadd.f32 %v1795, %v1801
    %vm1803 = vcmp.eq.s32.totalorder %v351, 1
    %vm1804 = vmand %vm1803, %vm1789
    %v1805 = vsel %vm1804, 1, 0
    %v1806 = vcvt.s32.f32 %v1805
    %v1807 = vstv %s1132
    %v1808 = vmul.f32 %v1807, %v1806
    %v1809 = vadd.f32 %v1802, %v1808
    %vm1810 = vmand %vm1803, %vm1796
    %v1811 = vsel %vm1810, 1, 0
    %v1812 = vcvt.s32.f32 %v1811
    %v1813 = vstv %s1165
    %v1814 = vmul.f32 %v1813, %v1812
    %v1815 = vadd.f32 %v1809, %v1814
    %vm1816 = vcmp.eq.s32.totalorder %v351, 2
    %vm1817 = vmand %vm1816, %vm1789
    %v1818 = vsel %vm1817, 1, 0
    %v1819 = vcvt.s32.f32 %v1818
    %v1820 = vstv %s1455
    %v1821 = vmul.f32 %v1820, %v1819
    %v1822 = vadd.f32 %v1815, %v1821
    %vm1823 = vmand %vm1816, %vm1796
    %v1824 = vsel %vm1823, 1, 0
    %v1825 = vcvt.s32.f32 %v1824
    %v1826 = vstv %s1488
    %v1827 = vmul.f32 %v1826, %v1825
    %v1828 = vadd.f32 %v1822, %v1827
    %vm1829 = vcmp.eq.s32.totalorder %v351, 3
    %vm1830 = vmand %vm1829, %vm1789
    %v1831 = vsel %vm1830, 1, 0
    %v1832 = vcvt.s32.f32 %v1831
    %v1833 = vstv %s1754
    %v1834 = vmul.f32 %v1833, %v1832
    %v1835 = vadd.f32 %v1828, %v1834
    %vm1836 = vmand %vm1829, %vm1796
    %v1837 = vsel %vm1836, 1, 0
    %v1838 = vcvt.s32.f32 %v1837
    %v1839 = vstv %s1787
    %v1840 = vmul.f32 %v1839, %v1838
    %v1841 = vadd.f32 %v1835, %v1840
    %v1842 = vld [vmem:[%s2] sm:$0xff]
    %v1843 = vadd.f32 %v1842, %v1841
    %1844 = vst [vmem:[%s2] sm:$0xff] %v1843
    // Predicated region
    $region22: #{_msgil_norm_loss_impl.1} parent=1 // pred_check
      _
    $region23: #{_msgil_norm_loss_impl.1} parent=1 // pred_check_branch
      %1846 = sbr.rel (0) target = $region25
    $region24: #{_msgil_norm_loss_impl.1} parent=1 // pred_region
      _
    $region25: #{_msgil_norm_loss_impl.1} parent=1 // pred_fallthru
      _
    // Predicated region
    $region26: #{_msgil_norm_loss_impl.1} parent=1 // pred_check
      _
    $region27: #{_msgil_norm_loss_impl.1} parent=1 // pred_check_branch
      %1848 = sbr.rel (0) target = $region29
    $region28: #{_msgil_norm_loss_impl.1} parent=1 // pred_region
      _
    $region29: #{_msgil_norm_loss_impl.1} parent=1 // pred_fallthru
      _
    %1849 = vsyncpa [#allocation3], 1
    %1850 = vsyncpa [#allocation5], 1

</llo_original>
